<compile_context>
chip_gen: v5e
topology: v5e:2x2
jax: 0.10.0
libtpu: 0.0.40
codegen_flags: <defaults>
</compile_context>

<pallas_src>
import jax
import jax.numpy as jnp
import numpy as np
from jax.experimental import pallas as pl
from jax.experimental.pallas import tpu as pltpu

# Small synthetic shapes consistent with the module.
B, S, E, H, FF, BOT = 2, 8, 32, 4, 64, 16
DH = E // H
EPS = 1e-5
_NEG = -1e30      # finite large-negative: a fully padded row degrades to a
                  # uniform softmax instead of producing NaN/inf.


def _layer_norm(z, eps=EPS):
    # One-pass mean / variance (single pair of cross-lane reductions).
    mu = jnp.mean(z, axis=-1, keepdims=True)
    mu2 = jnp.mean(z * z, axis=-1, keepdims=True)
    return (z - mu) * jax.lax.rsqrt(mu2 - mu * mu + eps)


def encoder_layer_kernel(x_ref, mask_ref,
                         wqkv_ref, bqkv_ref, wo_ref, bo_ref,
                         w1_ref, b1_ref, w2_ref, b2_ref,
                         wad_ref, bad_ref, wau_ref, bau_ref,
                         gamma_ref, beta_ref,
                         out_ref):
    f32 = jnp.float32
    bf16 = jnp.bfloat16

    x = x_ref[0]          # (S, E) f32 — one batch element per grid step
    mask = mask_ref[0]    # (1, S) additive key-padding mask (broadcast over heads & queries)

    # ---- fused QKV projection: one dense (S,E)@(E,3E) matmul.
    #      Attention scale already folded into the q columns/bias in the wrapper.
    qkv = jnp.dot(x.astype(bf16), wqkv_ref[...],
                  preferred_element_type=f32) + bqkv_ref[...]          # (S, 3E)

    # ---- head split with layout-friendly ops: 2-D transpose (XLU) then a
    #      sublane-aligned reshape (minor dim unchanged).  Feature-major layout:
    #      qkv_h[g, d, i] = feature g*DH+d of token i; g in [0,3H).
    qkv_h = qkv.T.reshape(3 * H, DH, S)                                # (3H, DH, S)
    q = jnp.swapaxes(qkv_h[:H], 1, 2)                                  # (H, S, DH)
    k = qkv_h[H:2 * H]                                                 # (H, DH, S)
    v = qkv_h[2 * H:]                                                  # (H, DH, S)

    # ---- scores: standard batched matmul (contract DH), all heads at once.
    s = jnp.einsum('hqd,hdk->hqk', q, k, preferred_element_type=f32) + mask   # (H, S, S)

    # ---- softmax (f32); EUP approx reciprocal instead of divide.
    m = jnp.max(s, axis=-1, keepdims=True)
    p = jnp.exp(s - m)
    p = p * pl.reciprocal(jnp.sum(p, axis=-1, keepdims=True), approx=True)

    # ---- P @ V in feature-major layout (contract keys, last-last form).
    ot = jnp.einsum('hdk,hqk->hdq', v, p, preferred_element_type=f32)  # (H, DH, S)

    # ---- head-concat relayout (sublane merge + 2-D transpose) then ONE dense
    #      (S,E)@(E,E) output projection against wo in its original layout.
    o_cat = ot.reshape(E, S).T                                         # (S, E)
    attn = jnp.dot(o_cat.astype(bf16), wo_ref[...],
                   preferred_element_type=f32) + bo_ref[...]           # (S, E)

    # ---- residual + LayerNorm (no affine)
    h1 = _layer_norm(x + attn)

    # ---- feed-forward block
    ff = jnp.maximum(jnp.dot(h1.astype(bf16), w1_ref[...],
                             preferred_element_type=f32) + b1_ref[...], 0.0)
    ff = jnp.dot(ff.astype(bf16), w2_ref[...],
                 preferred_element_type=f32) + b2_ref[...]
    h2 = _layer_norm(h1 + ff)

    # ---- adapter (bottleneck MLP, residual added together with h2 below)
    a = jnp.maximum(jnp.dot(h2.astype(bf16), wad_ref[...],
                            preferred_element_type=f32) + bad_ref[...], 0.0)
    a = jnp.dot(a.astype(bf16), wau_ref[...],
                preferred_element_type=f32) + bau_ref[...]

    # ---- final residual from the ORIGINAL input + trainable LayerNorm
    y = _layer_norm(x + a + h2) * gamma_ref[...] + beta_ref[...]
    out_ref[0] = y


def _rep_spec(shape):
    """Replicated (grid-invariant) whole-array spec for weights/biases."""
    nd = len(shape)
    return pl.BlockSpec(shape, lambda b, nd=nd: (0,) * nd)


def adapter_transformer_encoder_layer(x, key_padding_mask, params):
    """x: (B, S, E) f32; key_padding_mask: (B, S), True/1 == padded key."""
    (wqkv, bqkv, wo, bo, w1, b1, w2, b2,
     wad, bad, wau, bau, gamma, beta) = params

    # Fold the 1/sqrt(DH) attention scale into the q slice of the fused
    # in-projection (weights-only constant fold, done once per call on XLA side).
    scale = 1.0 / float(DH) ** 0.5
    wqkv_s = jnp.concatenate([wqkv[:, :E] * scale, wqkv[:, E:]], axis=1)
    bqkv_s = jnp.concatenate([bqkv[:, :E] * scale, bqkv[:, E:]], axis=1)

    bf16 = jnp.bfloat16
    weights = [
        wqkv_s.astype(bf16), bqkv_s, wo.astype(bf16), bo,
        w1.astype(bf16), b1, w2.astype(bf16), b2,
        wad.astype(bf16), bad, wau.astype(bf16), bau,
        gamma, beta,
    ]

    # Per-batch additive key-padding mask, shape (B, 1, S) — no (B*S)^2 blow-up.
    mask_add = jnp.where(key_padding_mask > 0, _NEG, 0.0).astype(jnp.float32)[:, None, :]

    inputs = [x, mask_add] + weights
    in_specs = [
        pl.BlockSpec((1, S, E), lambda b: (b, 0, 0)),   # activations, per batch
        pl.BlockSpec((1, 1, S), lambda b: (b, 0, 0)),   # key-padding row, per batch
    ] + [_rep_spec(w.shape) for w in weights]

    out = pl.pallas_call(
        encoder_layer_kernel,
        out_shape=jax.ShapeDtypeStruct((B, S, E), jnp.float32),
        grid=(B,),
        in_specs=in_specs,
        out_specs=pl.BlockSpec((1, S, E), lambda b: (b, 0, 0)),
        compiler_params=pltpu.CompilerParams(dimension_semantics=("parallel",)),
    )(*inputs)
    return out


def make_params(key):
    ks = jax.random.split(key, 14)

    def w(k, shape, scale=0.1):
        return (scale * jax.random.normal(k, shape)).astype(jnp.float32)

    wqkv = w(ks[0], (E, 3 * E))      # MHA in_proj (q|k|v), (in, out) layout
    bqkv = w(ks[1], (1, 3 * E))
    wo   = w(ks[2], (E, E))          # MHA out_proj
    bo   = w(ks[3], (1, E))
    w1   = w(ks[4], (E, FF))         # linear1
    b1   = w(ks[5], (1, FF))
    w2   = w(ks[6], (FF, E))         # linear2
    b2   = w(ks[7], (1, E))
    wad  = w(ks[8], (E, BOT))        # adapter down-projection
    bad  = w(ks[9], (1, BOT))
    wau  = w(ks[10], (BOT, E))       # adapter up-projection
    bau  = w(ks[11], (1, E))
    gamma = (1.0 + w(ks[12], (1, E))).astype(jnp.float32)  # trainable LN weight
    beta  = w(ks[13], (1, E))                              # trainable LN bias
    return [wqkv, bqkv, wo, bo, w1, b1, w2, b2, wad, bad, wau, bau, gamma, beta]


def reference(x, key_padding_mask, params):
    """Pure-JAX f32 reference mirroring the PyTorch forward."""
    (wqkv, bqkv, wo, bo, w1, b1, w2, b2,
     wad, bad, wau, bau, gamma, beta) = params
    qkv = x @ wqkv + bqkv
    q, k, v = jnp.split(qkv, 3, axis=-1)
    q = q.reshape(B, S, H, DH).transpose(0, 2, 1, 3)
    k = k.reshape(B, S, H, DH).transpose(0, 2, 1, 3)
    v = v.reshape(B, S, H, DH).transpose(0, 2, 1, 3)
    s = jnp.einsum('bhqd,bhkd->bhqk', q, k) / (float(DH) ** 0.5)
    neg = jnp.where(key_padding_mask > 0, _NEG, 0.0)[:, None, None, :]
    p = jax.nn.softmax(s + neg, axis=-1)
    attn = jnp.einsum('bhqk,bhkd->bhqd', p, v).transpose(0, 2, 1, 3).reshape(B, S, E)
    attn = attn @ wo + bo
    h1 = _layer_norm(x + attn)
    ff = jnp.maximum(h1 @ w1 + b1, 0.0) @ w2 + b2
    h2 = _layer_norm(h1 + ff)
    a = jnp.maximum(h2 @ wad + bad, 0.0) @ wau + bau
    return _layer_norm(x + a + h2) * gamma + beta


if __name__ == "__main__":
    key = jax.random.PRNGKey(0)
    kx, kp = jax.random.split(key)
    x = jax.random.normal(kx, (B, S, E), dtype=jnp.float32)

    # key_padding_mask: True/1 == position is padding (ignored as attention key).
    key_padding_mask = jnp.zeros((B, S), dtype=jnp.float32)
    key_padding_mask = key_padding_mask.at[1, -2:].set(1.0)

    params = make_params(kp)

    out = adapter_transformer_encoder_layer(x, key_padding_mask, params)
    out = jax.block_until_ready(out)

    ref = reference(x, key_padding_mask, params)
    # Tolerance reflects bf16 MXU operands on the dense projections + approx
    # reciprocal vs. the pure-f32 reference; structural bugs give O(0.1-1) errors.
    np.testing.assert_allclose(np.asarray(out), np.asarray(ref), rtol=3e-2, atol=3e-2)

    print("KERNEL_OK")
</pallas_src>

<mosaic_0001>
module attributes {stable_mosaic.version = 11 : i64} {
  func.func @encoder_layer_kernel(%arg0: i32, %arg1: memref<1x8x32xf32, #tpu.memory_space<vmem>>, %arg2: memref<1x1x8xf32, #tpu.memory_space<vmem>>, %arg3: memref<32x96xbf16, #tpu.memory_space<vmem>>, %arg4: memref<1x96xf32, #tpu.memory_space<vmem>>, %arg5: memref<32x32xbf16, #tpu.memory_space<vmem>>, %arg6: memref<1x32xf32, #tpu.memory_space<vmem>>, %arg7: memref<32x64xbf16, #tpu.memory_space<vmem>>, %arg8: memref<1x64xf32, #tpu.memory_space<vmem>>, %arg9: memref<64x32xbf16, #tpu.memory_space<vmem>>, %arg10: memref<1x32xf32, #tpu.memory_space<vmem>>, %arg11: memref<32x16xbf16, #tpu.memory_space<vmem>>, %arg12: memref<1x16xf32, #tpu.memory_space<vmem>>, %arg13: memref<16x32xbf16, #tpu.memory_space<vmem>>, %arg14: memref<1x32xf32, #tpu.memory_space<vmem>>, %arg15: memref<1x32xf32, #tpu.memory_space<vmem>>, %arg16: memref<1x32xf32, #tpu.memory_space<vmem>>, %arg17: memref<1x8x32xf32, #tpu.memory_space<vmem>>) attributes {dimension_semantics = [#tpu.dimension_semantics<parallel>], iteration_bounds = array<i64: 2>, scalar_prefetch = 0 : i64, scratch_operands = 0 : i64, tpu.core_type = #tpu.core_type<tc>, window_params = [{transform_indices = @transform_0, window_bounds = array<i64: 1, 8, 32>}, {transform_indices = @transform_1, window_bounds = array<i64: 1, 1, 8>}, {pipeline_mode = #tpu.pipeline_mode<synchronous>, transform_indices = @transform_2, window_bounds = array<i64: 32, 96>}, {pipeline_mode = #tpu.pipeline_mode<synchronous>, transform_indices = @transform_3, window_bounds = array<i64: 1, 96>}, {pipeline_mode = #tpu.pipeline_mode<synchronous>, transform_indices = @transform_4, window_bounds = array<i64: 32, 32>}, {pipeline_mode = #tpu.pipeline_mode<synchronous>, transform_indices = @transform_5, window_bounds = array<i64: 1, 32>}, {pipeline_mode = #tpu.pipeline_mode<synchronous>, transform_indices = @transform_6, window_bounds = array<i64: 32, 64>}, {pipeline_mode = #tpu.pipeline_mode<synchronous>, transform_indices = @transform_7, window_bounds = array<i64: 1, 64>}, {pipeline_mode = #tpu.pipeline_mode<synchronous>, transform_indices = @transform_8, window_bounds = array<i64: 64, 32>}, {pipeline_mode = #tpu.pipeline_mode<synchronous>, transform_indices = @transform_9, window_bounds = array<i64: 1, 32>}, {pipeline_mode = #tpu.pipeline_mode<synchronous>, transform_indices = @transform_10, window_bounds = array<i64: 32, 16>}, {pipeline_mode = #tpu.pipeline_mode<synchronous>, transform_indices = @transform_11, window_bounds = array<i64: 1, 16>}, {pipeline_mode = #tpu.pipeline_mode<synchronous>, transform_indices = @transform_12, window_bounds = array<i64: 16, 32>}, {pipeline_mode = #tpu.pipeline_mode<synchronous>, transform_indices = @transform_13, window_bounds = array<i64: 1, 32>}, {pipeline_mode = #tpu.pipeline_mode<synchronous>, transform_indices = @transform_14, window_bounds = array<i64: 1, 32>}, {pipeline_mode = #tpu.pipeline_mode<synchronous>, transform_indices = @transform_15, window_bounds = array<i64: 1, 32>}, {transform_indices = @transform_16, window_bounds = array<i64: 1, 8, 32>}]} {
    %c0 = arith.constant 0 : index
    %c0_0 = arith.constant 0 : index
    %c0_1 = arith.constant 0 : index
    %0 = vector.load %arg1[%c0, %c0_0, %c0_1] : memref<1x8x32xf32, #tpu.memory_space<vmem>>, vector<1x8x32xf32>
    %1 = vector.shape_cast %0 : vector<1x8x32xf32> to vector<8x32xf32>
    %c0_2 = arith.constant 0 : index
    %c0_3 = arith.constant 0 : index
    %c0_4 = arith.constant 0 : index
    %2 = vector.load %arg2[%c0_2, %c0_3, %c0_4] : memref<1x1x8xf32, #tpu.memory_space<vmem>>, vector<1x1x8xf32>
    %3 = vector.shape_cast %2 : vector<1x1x8xf32> to vector<1x8xf32>
    %4 = arith.truncf %1 : vector<8x32xf32> to vector<8x32xbf16>
    %c0_5 = arith.constant 0 : index
    %c0_6 = arith.constant 0 : index
    %5 = vector.load %arg3[%c0_5, %c0_6] : memref<32x96xbf16, #tpu.memory_space<vmem>>, vector<32x96xbf16>
    %cst = arith.constant dense<0.000000e+00> : vector<8x96xf32>
    %6 = tpu.matmul %4, %5, %cst {dimension_numbers = #tpu.dot_dimension_numbers<[1], [0], [0], [1], [0, 0, 1, 1], [], []>} : vector<8x32xbf16>, vector<32x96xbf16>, vector<8x96xf32> -> vector<8x96xf32>
    %c0_7 = arith.constant 0 : index
    %c0_8 = arith.constant 0 : index
    %7 = vector.load %arg4[%c0_7, %c0_8] : memref<1x96xf32, #tpu.memory_space<vmem>>, vector<1x96xf32>
    %8 = vector.broadcast %7 : vector<1x96xf32> to vector<8x96xf32>
    %9 = arith.addf %6, %8 : vector<8x96xf32>
    %10 = tpu.transpose %9, [1, 0] : vector<8x96xf32> -> vector<96x8xf32>
    %11 = vector.shape_cast %10 : vector<96x8xf32> to vector<12x8x8xf32>
    %12 = vector.extract_strided_slice %11 {offsets = [0, 0, 0], sizes = [4, 8, 8], strides = [1, 1, 1]} : vector<12x8x8xf32> to vector<4x8x8xf32>
    %13 = tpu.transpose %12, [0, 2, 1] : vector<4x8x8xf32> -> vector<4x8x8xf32>
    %14 = vector.extract_strided_slice %11 {offsets = [4, 0, 0], sizes = [4, 8, 8], strides = [1, 1, 1]} : vector<12x8x8xf32> to vector<4x8x8xf32>
    %15 = vector.extract_strided_slice %11 {offsets = [8, 0, 0], sizes = [4, 8, 8], strides = [1, 1, 1]} : vector<12x8x8xf32> to vector<4x8x8xf32>
    "tpu.trace_start"() <{level = 10 : i32, message = "hqd,hdk->hqk"}> : () -> ()
    %cst_9 = arith.constant dense<0.000000e+00> : vector<4x8x8xf32>
    %16 = tpu.matmul %13, %14, %cst_9 {dimension_numbers = #tpu.dot_dimension_numbers<[2], [1], [1], [2], [0, 0, 0, 1, 1, 2], [0], [0]>} : vector<4x8x8xf32>, vector<4x8x8xf32>, vector<4x8x8xf32> -> vector<4x8x8xf32>
    "tpu.trace_stop"() : () -> ()
    %17 = vector.shape_cast %3 : vector<1x8xf32> to vector<1x1x8xf32>
    %18 = vector.broadcast %17 : vector<1x1x8xf32> to vector<4x8x8xf32>
    %19 = arith.addf %16, %18 : vector<4x8x8xf32>
    %cst_10 = arith.constant dense<0xFF800000> : vector<4x8xf32>
    %20 = vector.multi_reduction <maximumf>, %19, %cst_10 [2] : vector<4x8x8xf32> to vector<4x8xf32>
    %21 = vector.shape_cast %20 : vector<4x8xf32> to vector<4x8x1xf32>
    %22 = vector.broadcast %21 : vector<4x8x1xf32> to vector<4x8x8xf32>
    %23 = arith.subf %19, %22 : vector<4x8x8xf32>
    %24 = math.exp %23 : vector<4x8x8xf32>
    %cst_11 = arith.constant dense<0.000000e+00> : vector<4x8xf32>
    %25 = vector.multi_reduction <add>, %24, %cst_11 [2] : vector<4x8x8xf32> to vector<4x8xf32>
    %26 = vector.shape_cast %25 : vector<4x8xf32> to vector<4x8x1xf32>
    %27 = tpu.reciprocal %26 {approx = true} : vector<4x8x1xf32> -> vector<4x8x1xf32>
    %28 = vector.broadcast %27 : vector<4x8x1xf32> to vector<4x8x8xf32>
    %29 = arith.mulf %24, %28 : vector<4x8x8xf32>
    "tpu.trace_start"() <{level = 10 : i32, message = "hdk,hqk->hdq"}> : () -> ()
    %cst_12 = arith.constant dense<0.000000e+00> : vector<4x8x8xf32>
    %30 = tpu.matmul %15, %29, %cst_12 {dimension_numbers = #tpu.dot_dimension_numbers<[2], [2], [1], [1], [0, 0, 0, 1, 1, 1], [0], [0]>} : vector<4x8x8xf32>, vector<4x8x8xf32>, vector<4x8x8xf32> -> vector<4x8x8xf32>
    "tpu.trace_stop"() : () -> ()
    %31 = vector.shape_cast %30 : vector<4x8x8xf32> to vector<32x8xf32>
    %32 = tpu.transpose %31, [1, 0] : vector<32x8xf32> -> vector<8x32xf32>
    %33 = arith.truncf %32 : vector<8x32xf32> to vector<8x32xbf16>
    %c0_13 = arith.constant 0 : index
    %c0_14 = arith.constant 0 : index
    %34 = vector.load %arg5[%c0_13, %c0_14] : memref<32x32xbf16, #tpu.memory_space<vmem>>, vector<32x32xbf16>
    %cst_15 = arith.constant dense<0.000000e+00> : vector<8x32xf32>
    %35 = tpu.matmul %33, %34, %cst_15 {dimension_numbers = #tpu.dot_dimension_numbers<[1], [0], [0], [1], [0, 0, 1, 1], [], []>} : vector<8x32xbf16>, vector<32x32xbf16>, vector<8x32xf32> -> vector<8x32xf32>
    %c0_16 = arith.constant 0 : index
    %c0_17 = arith.constant 0 : index
    %36 = vector.load %arg6[%c0_16, %c0_17] : memref<1x32xf32, #tpu.memory_space<vmem>>, vector<1x32xf32>
    %37 = vector.broadcast %36 : vector<1x32xf32> to vector<8x32xf32>
    %38 = arith.addf %35, %37 : vector<8x32xf32>
    %39 = arith.addf %1, %38 : vector<8x32xf32>
    %cst_18 = arith.constant dense<0.000000e+00> : vector<8xf32>
    %40 = vector.multi_reduction <add>, %39, %cst_18 [1] : vector<8x32xf32> to vector<8xf32>
    %41 = vector.shape_cast %40 : vector<8xf32> to vector<8x1xf32>
    %cst_19 = arith.constant 3.200000e+01 : f32
    %42 = vector.broadcast %cst_19 : f32 to vector<8x1xf32>
    %43 = arith.divf %41, %42 : vector<8x1xf32>
    %44 = arith.mulf %39, %39 : vector<8x32xf32>
    %cst_20 = arith.constant dense<0.000000e+00> : vector<8xf32>
    %45 = vector.multi_reduction <add>, %44, %cst_20 [1] : vector<8x32xf32> to vector<8xf32>
    %46 = vector.shape_cast %45 : vector<8xf32> to vector<8x1xf32>
    %cst_21 = arith.constant 3.200000e+01 : f32
    %47 = vector.broadcast %cst_21 : f32 to vector<8x1xf32>
    %48 = arith.divf %46, %47 : vector<8x1xf32>
    %49 = vector.broadcast %43 : vector<8x1xf32> to vector<8x32xf32>
    %50 = arith.subf %39, %49 : vector<8x32xf32>
    %51 = arith.mulf %43, %43 : vector<8x1xf32>
    %52 = arith.subf %48, %51 : vector<8x1xf32>
    %cst_22 = arith.constant 9.99999974E-6 : f32
    %53 = vector.broadcast %cst_22 : f32 to vector<8x1xf32>
    %54 = arith.addf %52, %53 : vector<8x1xf32>
    %55 = math.rsqrt %54 : vector<8x1xf32>
    %56 = vector.broadcast %55 : vector<8x1xf32> to vector<8x32xf32>
    %57 = arith.mulf %50, %56 : vector<8x32xf32>
    %58 = arith.truncf %57 : vector<8x32xf32> to vector<8x32xbf16>
    %c0_23 = arith.constant 0 : index
    %c0_24 = arith.constant 0 : index
    %59 = vector.load %arg7[%c0_23, %c0_24] : memref<32x64xbf16, #tpu.memory_space<vmem>>, vector<32x64xbf16>
    %cst_25 = arith.constant dense<0.000000e+00> : vector<8x64xf32>
    %60 = tpu.matmul %58, %59, %cst_25 {dimension_numbers = #tpu.dot_dimension_numbers<[1], [0], [0], [1], [0, 0, 1, 1], [], []>} : vector<8x32xbf16>, vector<32x64xbf16>, vector<8x64xf32> -> vector<8x64xf32>
    %c0_26 = arith.constant 0 : index
    %c0_27 = arith.constant 0 : index
    %61 = vector.load %arg8[%c0_26, %c0_27] : memref<1x64xf32, #tpu.memory_space<vmem>>, vector<1x64xf32>
    %62 = vector.broadcast %61 : vector<1x64xf32> to vector<8x64xf32>
    %63 = arith.addf %60, %62 : vector<8x64xf32>
    %cst_28 = arith.constant 0.000000e+00 : f32
    %64 = vector.broadcast %cst_28 : f32 to vector<8x64xf32>
    %65 = arith.maximumf %63, %64 : vector<8x64xf32>
    %66 = arith.truncf %65 : vector<8x64xf32> to vector<8x64xbf16>
    %c0_29 = arith.constant 0 : index
    %c0_30 = arith.constant 0 : index
    %67 = vector.load %arg9[%c0_29, %c0_30] : memref<64x32xbf16, #tpu.memory_space<vmem>>, vector<64x32xbf16>
    %cst_31 = arith.constant dense<0.000000e+00> : vector<8x32xf32>
    %68 = tpu.matmul %66, %67, %cst_31 {dimension_numbers = #tpu.dot_dimension_numbers<[1], [0], [0], [1], [0, 0, 1, 1], [], []>} : vector<8x64xbf16>, vector<64x32xbf16>, vector<8x32xf32> -> vector<8x32xf32>
    %c0_32 = arith.constant 0 : index
    %c0_33 = arith.constant 0 : index
    %69 = vector.load %arg10[%c0_32, %c0_33] : memref<1x32xf32, #tpu.memory_space<vmem>>, vector<1x32xf32>
    %70 = vector.broadcast %69 : vector<1x32xf32> to vector<8x32xf32>
    %71 = arith.addf %68, %70 : vector<8x32xf32>
    %72 = arith.addf %57, %71 : vector<8x32xf32>
    %cst_34 = arith.constant dense<0.000000e+00> : vector<8xf32>
    %73 = vector.multi_reduction <add>, %72, %cst_34 [1] : vector<8x32xf32> to vector<8xf32>
    %74 = vector.shape_cast %73 : vector<8xf32> to vector<8x1xf32>
    %cst_35 = arith.constant 3.200000e+01 : f32
    %75 = vector.broadcast %cst_35 : f32 to vector<8x1xf32>
    %76 = arith.divf %74, %75 : vector<8x1xf32>
    %77 = arith.mulf %72, %72 : vector<8x32xf32>
    %cst_36 = arith.constant dense<0.000000e+00> : vector<8xf32>
    %78 = vector.multi_reduction <add>, %77, %cst_36 [1] : vector<8x32xf32> to vector<8xf32>
    %79 = vector.shape_cast %78 : vector<8xf32> to vector<8x1xf32>
    %cst_37 = arith.constant 3.200000e+01 : f32
    %80 = vector.broadcast %cst_37 : f32 to vector<8x1xf32>
    %81 = arith.divf %79, %80 : vector<8x1xf32>
    %82 = vector.broadcast %76 : vector<8x1xf32> to vector<8x32xf32>
    %83 = arith.subf %72, %82 : vector<8x32xf32>
    %84 = arith.mulf %76, %76 : vector<8x1xf32>
    %85 = arith.subf %81, %84 : vector<8x1xf32>
    %cst_38 = arith.constant 9.99999974E-6 : f32
    %86 = vector.broadcast %cst_38 : f32 to vector<8x1xf32>
    %87 = arith.addf %85, %86 : vector<8x1xf32>
    %88 = math.rsqrt %87 : vector<8x1xf32>
    %89 = vector.broadcast %88 : vector<8x1xf32> to vector<8x32xf32>
    %90 = arith.mulf %83, %89 : vector<8x32xf32>
    %91 = arith.truncf %90 : vector<8x32xf32> to vector<8x32xbf16>
    %c0_39 = arith.constant 0 : index
    %c0_40 = arith.constant 0 : index
    %92 = vector.load %arg11[%c0_39, %c0_40] : memref<32x16xbf16, #tpu.memory_space<vmem>>, vector<32x16xbf16>
    %cst_41 = arith.constant dense<0.000000e+00> : vector<8x16xf32>
    %93 = tpu.matmul %91, %92, %cst_41 {dimension_numbers = #tpu.dot_dimension_numbers<[1], [0], [0], [1], [0, 0, 1, 1], [], []>} : vector<8x32xbf16>, vector<32x16xbf16>, vector<8x16xf32> -> vector<8x16xf32>
    %c0_42 = arith.constant 0 : index
    %c0_43 = arith.constant 0 : index
    %94 = vector.load %arg12[%c0_42, %c0_43] : memref<1x16xf32, #tpu.memory_space<vmem>>, vector<1x16xf32>
    %95 = vector.broadcast %94 : vector<1x16xf32> to vector<8x16xf32>
    %96 = arith.addf %93, %95 : vector<8x16xf32>
    %cst_44 = arith.constant 0.000000e+00 : f32
    %97 = vector.broadcast %cst_44 : f32 to vector<8x16xf32>
    %98 = arith.maximumf %96, %97 : vector<8x16xf32>
    %99 = arith.truncf %98 : vector<8x16xf32> to vector<8x16xbf16>
    %c0_45 = arith.constant 0 : index
    %c0_46 = arith.constant 0 : index
    %100 = vector.load %arg13[%c0_45, %c0_46] : memref<16x32xbf16, #tpu.memory_space<vmem>>, vector<16x32xbf16>
    %cst_47 = arith.constant dense<0.000000e+00> : vector<8x32xf32>
    %101 = tpu.matmul %99, %100, %cst_47 {dimension_numbers = #tpu.dot_dimension_numbers<[1], [0], [0], [1], [0, 0, 1, 1], [], []>} : vector<8x16xbf16>, vector<16x32xbf16>, vector<8x32xf32> -> vector<8x32xf32>
    %c0_48 = arith.constant 0 : index
    %c0_49 = arith.constant 0 : index
    %102 = vector.load %arg14[%c0_48, %c0_49] : memref<1x32xf32, #tpu.memory_space<vmem>>, vector<1x32xf32>
    %103 = vector.broadcast %102 : vector<1x32xf32> to vector<8x32xf32>
    %104 = arith.addf %101, %103 : vector<8x32xf32>
    %105 = arith.addf %1, %104 : vector<8x32xf32>
    %106 = arith.addf %105, %90 : vector<8x32xf32>
    %cst_50 = arith.constant dense<0.000000e+00> : vector<8xf32>
    %107 = vector.multi_reduction <add>, %106, %cst_50 [1] : vector<8x32xf32> to vector<8xf32>
    %108 = vector.shape_cast %107 : vector<8xf32> to vector<8x1xf32>
    %cst_51 = arith.constant 3.200000e+01 : f32
    %109 = vector.broadcast %cst_51 : f32 to vector<8x1xf32>
    %110 = arith.divf %108, %109 : vector<8x1xf32>
    %111 = arith.mulf %106, %106 : vector<8x32xf32>
    %cst_52 = arith.constant dense<0.000000e+00> : vector<8xf32>
    %112 = vector.multi_reduction <add>, %111, %cst_52 [1] : vector<8x32xf32> to vector<8xf32>
    %113 = vector.shape_cast %112 : vector<8xf32> to vector<8x1xf32>
    %cst_53 = arith.constant 3.200000e+01 : f32
    %114 = vector.broadcast %cst_53 : f32 to vector<8x1xf32>
    %115 = arith.divf %113, %114 : vector<8x1xf32>
    %116 = vector.broadcast %110 : vector<8x1xf32> to vector<8x32xf32>
    %117 = arith.subf %106, %116 : vector<8x32xf32>
    %118 = arith.mulf %110, %110 : vector<8x1xf32>
    %119 = arith.subf %115, %118 : vector<8x1xf32>
    %cst_54 = arith.constant 9.99999974E-6 : f32
    %120 = vector.broadcast %cst_54 : f32 to vector<8x1xf32>
    %121 = arith.addf %119, %120 : vector<8x1xf32>
    %122 = math.rsqrt %121 : vector<8x1xf32>
    %123 = vector.broadcast %122 : vector<8x1xf32> to vector<8x32xf32>
    %124 = arith.mulf %117, %123 : vector<8x32xf32>
    %c0_55 = arith.constant 0 : index
    %c0_56 = arith.constant 0 : index
    %125 = vector.load %arg15[%c0_55, %c0_56] : memref<1x32xf32, #tpu.memory_space<vmem>>, vector<1x32xf32>
    %126 = vector.broadcast %125 : vector<1x32xf32> to vector<8x32xf32>
    %127 = arith.mulf %124, %126 : vector<8x32xf32>
    %c0_57 = arith.constant 0 : index
    %c0_58 = arith.constant 0 : index
    %128 = vector.load %arg16[%c0_57, %c0_58] : memref<1x32xf32, #tpu.memory_space<vmem>>, vector<1x32xf32>
    %129 = vector.broadcast %128 : vector<1x32xf32> to vector<8x32xf32>
    %130 = arith.addf %127, %129 : vector<8x32xf32>
    %c0_59 = arith.constant 0 : index
    %c0_60 = arith.constant 0 : index
    %c0_61 = arith.constant 0 : index
    %131 = vector.load %arg17[%c0_59, %c0_60, %c0_61] : memref<1x8x32xf32, #tpu.memory_space<vmem>>, vector<1x8x32xf32>
    %132 = vector.shape_cast %131 : vector<1x8x32xf32> to vector<8x32xf32>
    %133 = vector.shape_cast %130 : vector<8x32xf32> to vector<1x8x32xf32>
    tpu.vector_store %arg17[%c0_59, %c0_60, %c0_61], %133 {strides = array<i32>} : memref<1x8x32xf32, #tpu.memory_space<vmem>>, vector<1x8x32xf32>,
    return
  }
  func.func @transform_0(%arg0: i32) -> (i32, i32, i32) {
    %c0_i32 = arith.constant 0 : i32
    %c0_i32_0 = arith.constant 0 : i32
    %c0_i32_1 = arith.constant 0 : i32
    return %arg0, %c0_i32, %c0_i32_0 : i32, i32, i32
  }
  func.func @transform_1(%arg0: i32) -> (i32, i32, i32) {
    %c0_i32 = arith.constant 0 : i32
    %c0_i32_0 = arith.constant 0 : i32
    %c0_i32_1 = arith.constant 0 : i32
    return %arg0, %c0_i32, %c0_i32_0 : i32, i32, i32
  }
  func.func @transform_2(%arg0: i32) -> (i32, i32) {
    %c0_i32 = arith.constant 0 : i32
    %c0_i32_0 = arith.constant 0 : i32
    %c0_i32_1 = arith.constant 0 : i32
    return %c0_i32, %c0_i32_0 : i32, i32
  }
  func.func @transform_3(%arg0: i32) -> (i32, i32) {
    %c0_i32 = arith.constant 0 : i32
    %c0_i32_0 = arith.constant 0 : i32
    %c0_i32_1 = arith.constant 0 : i32
    return %c0_i32, %c0_i32_0 : i32, i32
  }
  func.func @transform_4(%arg0: i32) -> (i32, i32) {
    %c0_i32 = arith.constant 0 : i32
    %c0_i32_0 = arith.constant 0 : i32
    %c0_i32_1 = arith.constant 0 : i32
    return %c0_i32, %c0_i32_0 : i32, i32
  }
  func.func @transform_5(%arg0: i32) -> (i32, i32) {
    %c0_i32 = arith.constant 0 : i32
    %c0_i32_0 = arith.constant 0 : i32
    %c0_i32_1 = arith.constant 0 : i32
    return %c0_i32, %c0_i32_0 : i32, i32
  }
  func.func @transform_6(%arg0: i32) -> (i32, i32) {
    %c0_i32 = arith.constant 0 : i32
    %c0_i32_0 = arith.constant 0 : i32
    %c0_i32_1 = arith.constant 0 : i32
    return %c0_i32, %c0_i32_0 : i32, i32
  }
  func.func @transform_7(%arg0: i32) -> (i32, i32) {
    %c0_i32 = arith.constant 0 : i32
    %c0_i32_0 = arith.constant 0 : i32
    %c0_i32_1 = arith.constant 0 : i32
    return %c0_i32, %c0_i32_0 : i32, i32
  }
  func.func @transform_8(%arg0: i32) -> (i32, i32) {
    %c0_i32 = arith.constant 0 : i32
    %c0_i32_0 = arith.constant 0 : i32
    %c0_i32_1 = arith.constant 0 : i32
    return %c0_i32, %c0_i32_0 : i32, i32
  }
  func.func @transform_9(%arg0: i32) -> (i32, i32) {
    %c0_i32 = arith.constant 0 : i32
    %c0_i32_0 = arith.constant 0 : i32
    %c0_i32_1 = arith.constant 0 : i32
    return %c0_i32, %c0_i32_0 : i32, i32
  }
  func.func @transform_10(%arg0: i32) -> (i32, i32) {
    %c0_i32 = arith.constant 0 : i32
    %c0_i32_0 = arith.constant 0 : i32
    %c0_i32_1 = arith.constant 0 : i32
    return %c0_i32, %c0_i32_0 : i32, i32
  }
  func.func @transform_11(%arg0: i32) -> (i32, i32) {
    %c0_i32 = arith.constant 0 : i32
    %c0_i32_0 = arith.constant 0 : i32
    %c0_i32_1 = arith.constant 0 : i32
    return %c0_i32, %c0_i32_0 : i32, i32
  }
  func.func @transform_12(%arg0: i32) -> (i32, i32) {
    %c0_i32 = arith.constant 0 : i32
    %c0_i32_0 = arith.constant 0 : i32
    %c0_i32_1 = arith.constant 0 : i32
    return %c0_i32, %c0_i32_0 : i32, i32
  }
  func.func @transform_13(%arg0: i32) -> (i32, i32) {
    %c0_i32 = arith.constant 0 : i32
    %c0_i32_0 = arith.constant 0 : i32
    %c0_i32_1 = arith.constant 0 : i32
    return %c0_i32, %c0_i32_0 : i32, i32
  }
  func.func @transform_14(%arg0: i32) -> (i32, i32) {
    %c0_i32 = arith.constant 0 : i32
    %c0_i32_0 = arith.constant 0 : i32
    %c0_i32_1 = arith.constant 0 : i32
    return %c0_i32, %c0_i32_0 : i32, i32
  }
  func.func @transform_15(%arg0: i32) -> (i32, i32) {
    %c0_i32 = arith.constant 0 : i32
    %c0_i32_0 = arith.constant 0 : i32
    %c0_i32_1 = arith.constant 0 : i32
    return %c0_i32, %c0_i32_0 : i32, i32
  }
  func.func @transform_16(%arg0: i32) -> (i32, i32, i32) {
    %c0_i32 = arith.constant 0 : i32
    %c0_i32_0 = arith.constant 0 : i32
    %c0_i32_1 = arith.constant 0 : i32
    return %arg0, %c0_i32, %c0_i32_0 : i32, i32, i32
  }
}

</mosaic_0001>

<llo_original>
// kernel: tpu_custom_call.1
$region0: #{tpu_custom_call.1}
  #allocation0 [shape = 'u32[]', space=smem, size = 0x4, offset = 0x4, fixed_abs, tag = 'smem constant byte address 0x4 - core index']
  #allocation1 [shape = 'u32[72,128]{1,0:T(1,128)}', space=vmem, size = 0x9000, scoped, tag = 'internal scratch']
  %s0 = inlined_call_operand.vmem [shape: f32[2,8,32], index: 0, kind: input, shape index: {}]
  %s1 = inlined_call_operand.hbm [shape: f32[2,1,8], index: 1, kind: input, shape index: {}]
  %s2 = inlined_call_operand.vmem [shape: bf16[32,96], index: 2, kind: input, shape index: {}]
  %s3 = inlined_call_operand.vmem [shape: f32[1,96], index: 3, kind: input, shape index: {}]
  %s4 = inlined_call_operand.vmem [shape: bf16[32,32], index: 4, kind: input, shape index: {}]
  %s5 = inlined_call_operand.hbm [shape: f32[1,32], index: 5, kind: input, shape index: {}]
  %s6 = inlined_call_operand.hbm [shape: bf16[32,64], index: 6, kind: input, shape index: {}]
  %s7 = inlined_call_operand.hbm [shape: f32[1,64], index: 7, kind: input, shape index: {}]
  %s8 = inlined_call_operand.vmem [shape: bf16[64,32], index: 8, kind: input, shape index: {}]
  %s9 = inlined_call_operand.hbm [shape: f32[1,32], index: 9, kind: input, shape index: {}]
  %s10 = inlined_call_operand.vmem [shape: bf16[32,16], index: 10, kind: input, shape index: {}]
  %s11 = inlined_call_operand.vmem [shape: f32[1,16], index: 11, kind: input, shape index: {}]
  %s12 = inlined_call_operand.vmem [shape: bf16[16,32], index: 12, kind: input, shape index: {}]
  %s13 = inlined_call_operand.vmem [shape: f32[1,32], index: 13, kind: input, shape index: {}]
  %s14 = inlined_call_operand.vmem [shape: f32[1,32], index: 14, kind: input, shape index: {}]
  %s15 = inlined_call_operand.vmem [shape: f32[1,32], index: 15, kind: input, shape index: {}]
  %s16 = inlined_call_operand.hbm [shape: f32[2,8,32], index: 16, kind: output, shape index: {}]
  %s17 = sld [smem:[#allocation0]]
  $region117: #{tpu_custom_call.1} parent=0
    _
  %s19 = ssub.s32 1, %s17
  %s20 = scalar_select 0, %s19, %s17
  $region1: #{tpu_custom_call.1} parent=0
    #allocation2 [shape = 'u8[1024]{0}', space=vmem, size = 0x400, scoped, tag = 'input window, operand 1']
    #allocation3 [shape = 's32[2]{0}', space=sflag, size = 0x8, scoped, tag = 'scoped memory for tpu_custom_call.1']
    #allocation4 [shape = 's32[2]{0}', space=sflag, size = 0x8, scoped, tag = 'scoped memory for tpu_custom_call.1']
    #allocation5 [shape = 'u8[512]{0}', space=vmem, size = 0x400, scoped, tag = 'input window, operand 5, single buffered']
    #allocation6 [shape = 's32[1]{0}', space=sflag, size = 0x4, scoped, tag = 'scoped memory for tpu_custom_call.1']
    #allocation7 [shape = 'u8[8192]{0}', space=vmem, size = 0x2000, scoped, tag = 'input window, operand 6, single buffered']
    #allocation8 [shape = 'u8[512]{0}', space=vmem, size = 0x400, scoped, tag = 'input window, operand 7, single buffered']
    #allocation9 [shape = 's32[1]{0}', space=sflag, size = 0x4, scoped, tag = 'scoped memory for tpu_custom_call.1']
    #allocation10 [shape = 'u8[512]{0}', space=vmem, size = 0x400, scoped, tag = 'input window, operand 9, single buffered']
    #allocation11 [shape = 'u8[8192]{0}', space=vmem, size = 0x2000, scoped, tag = 'output window, operand 0']
    %21 = vsyncpa [#allocation3], 0
    %s22 = scalar_lea.sflag [#allocation3], 1
    %23 = vsyncpa %s22, 0
    %24 = vsyncpa [#allocation6], 0
    %25 = vsyncpa [#allocation9], 0
    %26 = vsyncpa [#allocation4], 0
    %s27 = scalar_lea.sflag [#allocation4], 1
    %28 = vsyncpa %s27, 0
    loop: start=0, step=1, limit=4
    $region2: #{tpu_custom_call.1} parent=1 // loop_pre_header
      _
    $region3: #{tpu_custom_call.1} parent=1 // loop_header
      %s30 = sphi 0, %s34
      %p31 = scmp.ge.s32.totalorder %s30, 4
      %s40 = sphi 0, %s42
      %s43 = sphi 0, %s40
      %s44 = sphi 0, %s43
      %s60 = sphi 0, %s44
      %s66 = sphi 0, %s68
      %s69 = sphi 0, %s66
      %s70 = sphi 0, %s69
      %s86 = sphi 0, %s70
      %s90 = sphi 0, %s90
      %s92 = sphi 0, %s90
      %s93 = sphi 0, %s92
      %s107 = sphi 0, %s93
      %s111 = sphi 0, %s111
      %s113 = sphi 0, %s111
      %s114 = sphi 0, %s113
      %s128 = sphi 0, %s114
      %s132 = sphi 0, %s132
      %s134 = sphi 0, %s132
      %s135 = sphi 0, %s134
      %s149 = sphi 0, %s135
      %s153 = sphi 0, %s153
      %s155 = sphi 0, %s153
      %s156 = sphi 0, %s155
      %s170 = sphi 0, %s156
      %s174 = sphi 0, %s174
      %s176 = sphi 0, %s174
      %s177 = sphi 0, %s176
      %s191 = sphi 0, %s177
      %s195 = sphi 0, %s195
      %s197 = sphi 0, %s195
      %s198 = sphi 0, %s197
      %s212 = sphi 0, %s198
      %s216 = sphi 0, %s216
      %s218 = sphi 0, %s216
      %s219 = sphi 0, %s218
      %s233 = sphi 0, %s219
      %s237 = sphi 0, %s237
      %s239 = sphi 0, %s237
      %s240 = sphi 0, %s239
      %s254 = sphi 0, %s240
      %s258 = sphi 0, %s258
      %s260 = sphi 0, %s258
      %s261 = sphi 0, %s260
      %s275 = sphi 0, %s261
      %s279 = sphi 0, %s279
      %s281 = sphi 0, %s279
      %s282 = sphi 0, %s281
      %s296 = sphi 0, %s282
      %s300 = sphi 0, %s300
      %s302 = sphi 0, %s300
      %s303 = sphi 0, %s302
      %s317 = sphi 0, %s303
      %s321 = sphi 0, %s321
      %s323 = sphi 0, %s321
      %s324 = sphi 0, %s323
      %s338 = sphi 0, %s324
      %s342 = sphi 0, %s342
      %s344 = sphi 0, %s342
      %s345 = sphi 0, %s344
      %s359 = sphi 0, %s345
      %s363 = sphi 0, %s363
      %s365 = sphi 0, %s363
      %s366 = sphi 0, %s365
      %s380 = sphi 0, %s366
      %s386 = sphi 0, %s388
      %s389 = sphi 0, %s386
      %s390 = sphi 0, %s389
      %s406 = sphi 0, %s390
    $region4: #{tpu_custom_call.1} parent=1 // loop_header_branch
      %33 = sbr.rel (%p31) target = $region8
    $region5: #{tpu_custom_call.1} parent=1 // loop_body
      %s35 = ssub.s32 %s30, 1
      %s36 = ssub.s32 %s30, 2
      %s37 = sadd.s32 %s30, 1
      %s38 = ssub.s32 %s30, %s37
      %p39 = scmp.eq.s32.totalorder %s38, 0
      %s41 = sadd.s32 %s40, 1
      %s42 = scalar_select %p39, %s40, %s41
      %p45 = pneg %p39
      %p46 = scmp.eq.s32.totalorder %s30, 1
      %p47 = por %p45, %p46
      %p48 = scmp.ne.s32.totalorder %s40, %s43
      %p49 = scmp.eq.s32.totalorder %s30, 0
      %p50 = por %p48, %p49
      %p51 = scmp.ne.s32.totalorder %s40, %s43
      %p52 = scmp.eq.s32.totalorder %s35, 1
      %p53 = por %p51, %p52
      %p54 = scmp.ne.s32.totalorder %s43, %s44
      %p55 = scmp.eq.s32.totalorder %s35, 0
      %p56 = por %p54, %p55
      %p57 = scmp.ne.s32.totalorder %s43, %s44
      %p58 = scmp.eq.s32.totalorder %s36, 1
      %p59 = por %p57, %p58
      %p61 = scmp.ne.s32.totalorder %s44, %s60
      %p62 = scmp.eq.s32.totalorder %s36, 0
      %p63 = por %p61, %p62
      %s64 = ssub.s32 %s30, %s37
      %p65 = scmp.eq.s32.totalorder %s64, 0
      %s67 = sadd.s32 %s66, 1
      %s68 = scalar_select %p65, %s66, %s67
      %p71 = pneg %p65
      %p72 = scmp.eq.s32.totalorder %s30, 1
      %p73 = por %p71, %p72
      %p74 = scmp.ne.s32.totalorder %s66, %s69
      %p75 = scmp.eq.s32.totalorder %s30, 0
      %p76 = por %p74, %p75
      %p77 = scmp.ne.s32.totalorder %s66, %s69
      %p78 = scmp.eq.s32.totalorder %s35, 1
      %p79 = por %p77, %p78
      %p80 = scmp.ne.s32.totalorder %s69, %s70
      %p81 = scmp.eq.s32.totalorder %s35, 0
      %p82 = por %p80, %p81
      %p83 = scmp.ne.s32.totalorder %s69, %s70
      %p84 = scmp.eq.s32.totalorder %s36, 1
      %p85 = por %p83, %p84
      %p87 = scmp.ne.s32.totalorder %s70, %s86
      %p88 = scmp.eq.s32.totalorder %s36, 0
      %p89 = por %p87, %p88
      %s91 = sadd.s32 %s90, 1
      %p94 = scmp.eq.s32.totalorder %s30, 1
      %p95 = scmp.ne.s32.totalorder %s90, %s92
      %p96 = scmp.eq.s32.totalorder %s30, 0
      %p97 = por %p95, %p96
      %p98 = scmp.ne.s32.totalorder %s90, %s92
      %p99 = scmp.eq.s32.totalorder %s35, 1
      %p100 = por %p98, %p99
      %p101 = scmp.ne.s32.totalorder %s92, %s93
      %p102 = scmp.eq.s32.totalorder %s35, 0
      %p103 = por %p101, %p102
      %p104 = scmp.ne.s32.totalorder %s92, %s93
      %p105 = scmp.eq.s32.totalorder %s36, 1
      %p106 = por %p104, %p105
      %p108 = scmp.ne.s32.totalorder %s93, %s107
      %p109 = scmp.eq.s32.totalorder %s36, 0
      %p110 = por %p108, %p109
      %s112 = sadd.s32 %s111, 1
      %p115 = scmp.eq.s32.totalorder %s30, 1
      %p116 = scmp.ne.s32.totalorder %s111, %s113
      %p117 = scmp.eq.s32.totalorder %s30, 0
      %p118 = por %p116, %p117
      %p119 = scmp.ne.s32.totalorder %s111, %s113
      %p120 = scmp.eq.s32.totalorder %s35, 1
      %p121 = por %p119, %p120
      %p122 = scmp.ne.s32.totalorder %s113, %s114
      %p123 = scmp.eq.s32.totalorder %s35, 0
      %p124 = por %p122, %p123
      %p125 = scmp.ne.s32.totalorder %s113, %s114
      %p126 = scmp.eq.s32.totalorder %s36, 1
      %p127 = por %p125, %p126
      %p129 = scmp.ne.s32.totalorder %s114, %s128
      %p130 = scmp.eq.s32.totalorder %s36, 0
      %p131 = por %p129, %p130
      %s133 = sadd.s32 %s132, 1
      %p136 = scmp.eq.s32.totalorder %s30, 1
      %p137 = scmp.ne.s32.totalorder %s132, %s134
      %p138 = scmp.eq.s32.totalorder %s30, 0
      %p139 = por %p137, %p138
      %p140 = scmp.ne.s32.totalorder %s132, %s134
      %p141 = scmp.eq.s32.totalorder %s35, 1
      %p142 = por %p140, %p141
      %p143 = scmp.ne.s32.totalorder %s134, %s135
      %p144 = scmp.eq.s32.totalorder %s35, 0
      %p145 = por %p143, %p144
      %p146 = scmp.ne.s32.totalorder %s134, %s135
      %p147 = scmp.eq.s32.totalorder %s36, 1
      %p148 = por %p146, %p147
      %p150 = scmp.ne.s32.totalorder %s135, %s149
      %p151 = scmp.eq.s32.totalorder %s36, 0
      %p152 = por %p150, %p151
      %s154 = sadd.s32 %s153, 1
      %p157 = scmp.eq.s32.totalorder %s30, 1
      %p158 = scmp.ne.s32.totalorder %s153, %s155
      %p159 = scmp.eq.s32.totalorder %s30, 0
      %p160 = por %p158, %p159
      %p161 = scmp.ne.s32.totalorder %s153, %s155
      %p162 = scmp.eq.s32.totalorder %s35, 1
      %p163 = por %p161, %p162
      %p164 = scmp.ne.s32.totalorder %s155, %s156
      %p165 = scmp.eq.s32.totalorder %s35, 0
      %p166 = por %p164, %p165
      %p167 = scmp.ne.s32.totalorder %s155, %s156
      %p168 = scmp.eq.s32.totalorder %s36, 1
      %p169 = por %p167, %p168
      %p171 = scmp.ne.s32.totalorder %s156, %s170
      %p172 = scmp.eq.s32.totalorder %s36, 0
      %p173 = por %p171, %p172
      %s175 = sadd.s32 %s174, 1
      %p178 = scmp.eq.s32.totalorder %s30, 1
      %p179 = scmp.ne.s32.totalorder %s174, %s176
      %p180 = scmp.eq.s32.totalorder %s30, 0
      %p181 = por %p179, %p180
      %p182 = scmp.ne.s32.totalorder %s174, %s176
      %p183 = scmp.eq.s32.totalorder %s35, 1
      %p184 = por %p182, %p183
      %p185 = scmp.ne.s32.totalorder %s176, %s177
      %p186 = scmp.eq.s32.totalorder %s35, 0
      %p187 = por %p185, %p186
      %p188 = scmp.ne.s32.totalorder %s176, %s177
      %p189 = scmp.eq.s32.totalorder %s36, 1
      %p190 = por %p188, %p189
      %p192 = scmp.ne.s32.totalorder %s177, %s191
      %p193 = scmp.eq.s32.totalorder %s36, 0
      %p194 = por %p192, %p193
      %s196 = sadd.s32 %s195, 1
      %p199 = scmp.eq.s32.totalorder %s30, 1
      %p200 = scmp.ne.s32.totalorder %s195, %s197
      %p201 = scmp.eq.s32.totalorder %s30, 0
      %p202 = por %p200, %p201
      %p203 = scmp.ne.s32.totalorder %s195, %s197
      %p204 = scmp.eq.s32.totalorder %s35, 1
      %p205 = por %p203, %p204
      %p206 = scmp.ne.s32.totalorder %s197, %s198
      %p207 = scmp.eq.s32.totalorder %s35, 0
      %p208 = por %p206, %p207
      %p209 = scmp.ne.s32.totalorder %s197, %s198
      %p210 = scmp.eq.s32.totalorder %s36, 1
      %p211 = por %p209, %p210
      %p213 = scmp.ne.s32.totalorder %s198, %s212
      %p214 = scmp.eq.s32.totalorder %s36, 0
      %p215 = por %p213, %p214
      %s217 = sadd.s32 %s216, 1
      %p220 = scmp.eq.s32.totalorder %s30, 1
      %p221 = scmp.ne.s32.totalorder %s216, %s218
      %p222 = scmp.eq.s32.totalorder %s30, 0
      %p223 = por %p221, %p222
      %p224 = scmp.ne.s32.totalorder %s216, %s218
      %p225 = scmp.eq.s32.totalorder %s35, 1
      %p226 = por %p224, %p225
      %p227 = scmp.ne.s32.totalorder %s218, %s219
      %p228 = scmp.eq.s32.totalorder %s35, 0
      %p229 = por %p227, %p228
      %p230 = scmp.ne.s32.totalorder %s218, %s219
      %p231 = scmp.eq.s32.totalorder %s36, 1
      %p232 = por %p230, %p231
      %p234 = scmp.ne.s32.totalorder %s219, %s233
      %p235 = scmp.eq.s32.totalorder %s36, 0
      %p236 = por %p234, %p235
      %s238 = sadd.s32 %s237, 1
      %p241 = scmp.eq.s32.totalorder %s30, 1
      %p242 = scmp.ne.s32.totalorder %s237, %s239
      %p243 = scmp.eq.s32.totalorder %s30, 0
      %p244 = por %p242, %p243
      %p245 = scmp.ne.s32.totalorder %s237, %s239
      %p246 = scmp.eq.s32.totalorder %s35, 1
      %p247 = por %p245, %p246
      %p248 = scmp.ne.s32.totalorder %s239, %s240
      %p249 = scmp.eq.s32.totalorder %s35, 0
      %p250 = por %p248, %p249
      %p251 = scmp.ne.s32.totalorder %s239, %s240
      %p252 = scmp.eq.s32.totalorder %s36, 1
      %p253 = por %p251, %p252
      %p255 = scmp.ne.s32.totalorder %s240, %s254
      %p256 = scmp.eq.s32.totalorder %s36, 0
      %p257 = por %p255, %p256
      %s259 = sadd.s32 %s258, 1
      %p262 = scmp.eq.s32.totalorder %s30, 1
      %p263 = scmp.ne.s32.totalorder %s258, %s260
      %p264 = scmp.eq.s32.totalorder %s30, 0
      %p265 = por %p263, %p264
      %p266 = scmp.ne.s32.totalorder %s258, %s260
      %p267 = scmp.eq.s32.totalorder %s35, 1
      %p268 = por %p266, %p267
      %p269 = scmp.ne.s32.totalorder %s260, %s261
      %p270 = scmp.eq.s32.totalorder %s35, 0
      %p271 = por %p269, %p270
      %p272 = scmp.ne.s32.totalorder %s260, %s261
      %p273 = scmp.eq.s32.totalorder %s36, 1
      %p274 = por %p272, %p273
      %p276 = scmp.ne.s32.totalorder %s261, %s275
      %p277 = scmp.eq.s32.totalorder %s36, 0
      %p278 = por %p276, %p277
      %s280 = sadd.s32 %s279, 1
      %p283 = scmp.eq.s32.totalorder %s30, 1
      %p284 = scmp.ne.s32.totalorder %s279, %s281
      %p285 = scmp.eq.s32.totalorder %s30, 0
      %p286 = por %p284, %p285
      %p287 = scmp.ne.s32.totalorder %s279, %s281
      %p288 = scmp.eq.s32.totalorder %s35, 1
      %p289 = por %p287, %p288
      %p290 = scmp.ne.s32.totalorder %s281, %s282
      %p291 = scmp.eq.s32.totalorder %s35, 0
      %p292 = por %p290, %p291
      %p293 = scmp.ne.s32.totalorder %s281, %s282
      %p294 = scmp.eq.s32.totalorder %s36, 1
      %p295 = por %p293, %p294
      %p297 = scmp.ne.s32.totalorder %s282, %s296
      %p298 = scmp.eq.s32.totalorder %s36, 0
      %p299 = por %p297, %p298
      %s301 = sadd.s32 %s300, 1
      %p304 = scmp.eq.s32.totalorder %s30, 1
      %p305 = scmp.ne.s32.totalorder %s300, %s302
      %p306 = scmp.eq.s32.totalorder %s30, 0
      %p307 = por %p305, %p306
      %p308 = scmp.ne.s32.totalorder %s300, %s302
      %p309 = scmp.eq.s32.totalorder %s35, 1
      %p310 = por %p308, %p309
      %p311 = scmp.ne.s32.totalorder %s302, %s303
      %p312 = scmp.eq.s32.totalorder %s35, 0
      %p313 = por %p311, %p312
      %p314 = scmp.ne.s32.totalorder %s302, %s303
      %p315 = scmp.eq.s32.totalorder %s36, 1
      %p316 = por %p314, %p315
      %p318 = scmp.ne.s32.totalorder %s303, %s317
      %p319 = scmp.eq.s32.totalorder %s36, 0
      %p320 = por %p318, %p319
      %s322 = sadd.s32 %s321, 1
      %p325 = scmp.eq.s32.totalorder %s30, 1
      %p326 = scmp.ne.s32.totalorder %s321, %s323
      %p327 = scmp.eq.s32.totalorder %s30, 0
      %p328 = por %p326, %p327
      %p329 = scmp.ne.s32.totalorder %s321, %s323
      %p330 = scmp.eq.s32.totalorder %s35, 1
      %p331 = por %p329, %p330
      %p332 = scmp.ne.s32.totalorder %s323, %s324
      %p333 = scmp.eq.s32.totalorder %s35, 0
      %p334 = por %p332, %p333
      %p335 = scmp.ne.s32.totalorder %s323, %s324
      %p336 = scmp.eq.s32.totalorder %s36, 1
      %p337 = por %p335, %p336
      %p339 = scmp.ne.s32.totalorder %s324, %s338
      %p340 = scmp.eq.s32.totalorder %s36, 0
      %p341 = por %p339, %p340
      %s343 = sadd.s32 %s342, 1
      %p346 = scmp.eq.s32.totalorder %s30, 1
      %p347 = scmp.ne.s32.totalorder %s342, %s344
      %p348 = scmp.eq.s32.totalorder %s30, 0
      %p349 = por %p347, %p348
      %p350 = scmp.ne.s32.totalorder %s342, %s344
      %p351 = scmp.eq.s32.totalorder %s35, 1
      %p352 = por %p350, %p351
      %p353 = scmp.ne.s32.totalorder %s344, %s345
      %p354 = scmp.eq.s32.totalorder %s35, 0
      %p355 = por %p353, %p354
      %p356 = scmp.ne.s32.totalorder %s344, %s345
      %p357 = scmp.eq.s32.totalorder %s36, 1
      %p358 = por %p356, %p357
      %p360 = scmp.ne.s32.totalorder %s345, %s359
      %p361 = scmp.eq.s32.totalorder %s36, 0
      %p362 = por %p360, %p361
      %s364 = sadd.s32 %s363, 1
      %p367 = scmp.eq.s32.totalorder %s30, 1
      %p368 = scmp.ne.s32.totalorder %s363, %s365
      %p369 = scmp.eq.s32.totalorder %s30, 0
      %p370 = por %p368, %p369
      %p371 = scmp.ne.s32.totalorder %s363, %s365
      %p372 = scmp.eq.s32.totalorder %s35, 1
      %p373 = por %p371, %p372
      %p374 = scmp.ne.s32.totalorder %s365, %s366
      %p375 = scmp.eq.s32.totalorder %s35, 0
      %p376 = por %p374, %p375
      %p377 = scmp.ne.s32.totalorder %s365, %s366
      %p378 = scmp.eq.s32.totalorder %s36, 1
      %p379 = por %p377, %p378
      %p381 = scmp.ne.s32.totalorder %s366, %s380
      %p382 = scmp.eq.s32.totalorder %s36, 0
      %p383 = por %p381, %p382
      %s384 = ssub.s32 %s30, %s37
      %p385 = scmp.eq.s32.totalorder %s384, 0
      %s387 = sadd.s32 %s386, 1
      %s388 = scalar_select %p385, %s386, %s387
      %p391 = pneg %p385
      %p392 = scmp.eq.s32.totalorder %s30, 1
      %p393 = por %p391, %p392
      %p394 = scmp.ne.s32.totalorder %s386, %s389
      %p395 = scmp.eq.s32.totalorder %s30, 0
      %p396 = por %p394, %p395
      %p397 = scmp.ne.s32.totalorder %s386, %s389
      %p398 = scmp.eq.s32.totalorder %s35, 1
      %p399 = por %p397, %p398
      %p400 = scmp.ne.s32.totalorder %s389, %s390
      %p401 = scmp.eq.s32.totalorder %s35, 0
      %p402 = por %p400, %p401
      %p403 = scmp.ne.s32.totalorder %s389, %s390
      %p404 = scmp.eq.s32.totalorder %s36, 1
      %p405 = por %p403, %p404
      %p407 = scmp.ne.s32.totalorder %s390, %s406
      %p408 = scmp.eq.s32.totalorder %s36, 0
      %p409 = por %p407, %p408
      %p410 = scmp.le.s32.totalorder 1, %s30
      %p411 = scmp.lt.s32.totalorder %s30, 3
      %p412 = pnand %p410, %p411
      %p413 = pneg %p412
      // Predicated region
      $region9: #{tpu_custom_call.1} parent=5 // pred_check
        _
      $region10: #{tpu_custom_call.1} parent=5 // pred_check_branch
        %415 = sbr.rel (%p412) target = $region12
      $region11: #{tpu_custom_call.1} parent=5 // pred_region
        %s416 = ssub.s32 %s30, 1
        // Predicated region
        $region13: #{tpu_custom_call.1} parent=11 // pred_check
          %p417 = pneg %p103
        $region14: #{tpu_custom_call.1} parent=11 // pred_check_branch
          %419 = sbr.rel (%p417) target = $region16
        $region15: #{tpu_custom_call.1} parent=11 // pred_region
          _
        $region16: #{tpu_custom_call.1} parent=11 // pred_fallthru
          _
        // Predicated region
        $region17: #{tpu_custom_call.1} parent=11 // pred_check
          %p420 = pneg %p124
        $region18: #{tpu_custom_call.1} parent=11 // pred_check_branch
          %422 = sbr.rel (%p420) target = $region20
        $region19: #{tpu_custom_call.1} parent=11 // pred_region
          _
        $region20: #{tpu_custom_call.1} parent=11 // pred_fallthru
          _
        // Predicated region
        $region21: #{tpu_custom_call.1} parent=11 // pred_check
          %p423 = pneg %p145
        $region22: #{tpu_custom_call.1} parent=11 // pred_check_branch
          %425 = sbr.rel (%p423) target = $region24
        $region23: #{tpu_custom_call.1} parent=11 // pred_region
          _
        $region24: #{tpu_custom_call.1} parent=11 // pred_fallthru
          _
        // Predicated region
        $region25: #{tpu_custom_call.1} parent=11 // pred_check
          %p426 = pneg %p166
        $region26: #{tpu_custom_call.1} parent=11 // pred_check_branch
          %428 = sbr.rel (%p426) target = $region28
        $region27: #{tpu_custom_call.1} parent=11 // pred_region
          %430 = vsyncadd [#allocation6], 0
          %s432 = sshll.u32 %s5, 4
          %s433 = int_to_ptr.hbm [resolvable:$true] %s432
          %s434 = sshll.u32 [#allocation5], 4
          %s435 = int_to_ptr.vmem [resolvable:$true] %s434
          %437 = dma.hbm_to_vmem [thread:$0]  %s433, 16, %s435, [#allocation6]
        $region28: #{tpu_custom_call.1} parent=11 // pred_fallthru
          _
        // Predicated region
        $region29: #{tpu_custom_call.1} parent=11 // pred_check
          %p438 = pneg %p187
        $region30: #{tpu_custom_call.1} parent=11 // pred_check_branch
          %440 = sbr.rel (%p438) target = $region32
        $region31: #{tpu_custom_call.1} parent=11 // pred_region
          %442 = vsyncadd [#allocation6], 0
          %s443 = sshll.u32 %s6, 4
          %s444 = int_to_ptr.hbm [resolvable:$true] %s443
          %s445 = sshll.u32 [#allocation7], 4
          %s446 = int_to_ptr.vmem [resolvable:$true] %s445
          %451 = dma.hbm_to_vmem [thread:$0]  %s444, 256, %s446, [#allocation6], 64, 64, 4
        $region32: #{tpu_custom_call.1} parent=11 // pred_fallthru
          _
        // Predicated region
        $region33: #{tpu_custom_call.1} parent=11 // pred_check
          %p452 = pneg %p208
        $region34: #{tpu_custom_call.1} parent=11 // pred_check_branch
          %454 = sbr.rel (%p452) target = $region36
        $region35: #{tpu_custom_call.1} parent=11 // pred_region
          %456 = vsyncadd [#allocation9], 0
          %s458 = sshll.u32 %s7, 4
          %s459 = int_to_ptr.hbm [resolvable:$true] %s458
          %s460 = sshll.u32 [#allocation8], 4
          %s461 = int_to_ptr.vmem [resolvable:$true] %s460
          %463 = dma.hbm_to_vmem [thread:$0]  %s459, 16, %s461, [#allocation9]
        $region36: #{tpu_custom_call.1} parent=11 // pred_fallthru
          _
        // Predicated region
        $region37: #{tpu_custom_call.1} parent=11 // pred_check
          %p464 = pneg %p229
        $region38: #{tpu_custom_call.1} parent=11 // pred_check_branch
          %466 = sbr.rel (%p464) target = $region40
        $region39: #{tpu_custom_call.1} parent=11 // pred_region
          _
        $region40: #{tpu_custom_call.1} parent=11 // pred_fallthru
          _
        // Predicated region
        $region41: #{tpu_custom_call.1} parent=11 // pred_check
          %p467 = pneg %p250
        $region42: #{tpu_custom_call.1} parent=11 // pred_check_branch
          %469 = sbr.rel (%p467) target = $region44
        $region43: #{tpu_custom_call.1} parent=11 // pred_region
          %471 = vsyncadd [#allocation9], 0
          %s473 = sshll.u32 %s9, 4
          %s474 = int_to_ptr.hbm [resolvable:$true] %s473
          %s475 = sshll.u32 [#allocation10], 4
          %s476 = int_to_ptr.vmem [resolvable:$true] %s475
          %478 = dma.hbm_to_vmem [thread:$0]  %s474, 16, %s476, [#allocation9]
        $region44: #{tpu_custom_call.1} parent=11 // pred_fallthru
          _
        // Predicated region
        $region45: #{tpu_custom_call.1} parent=11 // pred_check
          %p479 = pneg %p271
        $region46: #{tpu_custom_call.1} parent=11 // pred_check_branch
          %481 = sbr.rel (%p479) target = $region48
        $region47: #{tpu_custom_call.1} parent=11 // pred_region
          _
        $region48: #{tpu_custom_call.1} parent=11 // pred_fallthru
          _
        // Predicated region
        $region49: #{tpu_custom_call.1} parent=11 // pred_check
          %p482 = pneg %p292
        $region50: #{tpu_custom_call.1} parent=11 // pred_check_branch
          %484 = sbr.rel (%p482) target = $region52
        $region51: #{tpu_custom_call.1} parent=11 // pred_region
          _
        $region52: #{tpu_custom_call.1} parent=11 // pred_fallthru
          _
        // Predicated region
        $region53: #{tpu_custom_call.1} parent=11 // pred_check
          %p485 = pneg %p313
        $region54: #{tpu_custom_call.1} parent=11 // pred_check_branch
          %487 = sbr.rel (%p485) target = $region56
        $region55: #{tpu_custom_call.1} parent=11 // pred_region
          _
        $region56: #{tpu_custom_call.1} parent=11 // pred_fallthru
          _
        // Predicated region
        $region57: #{tpu_custom_call.1} parent=11 // pred_check
          %p488 = pneg %p334
        $region58: #{tpu_custom_call.1} parent=11 // pred_check_branch
          %490 = sbr.rel (%p488) target = $region60
        $region59: #{tpu_custom_call.1} parent=11 // pred_region
          _
        $region60: #{tpu_custom_call.1} parent=11 // pred_fallthru
          _
        // Predicated region
        $region61: #{tpu_custom_call.1} parent=11 // pred_check
          %p491 = pneg %p355
        $region62: #{tpu_custom_call.1} parent=11 // pred_check_branch
          %493 = sbr.rel (%p491) target = $region64
        $region63: #{tpu_custom_call.1} parent=11 // pred_region
          _
        $region64: #{tpu_custom_call.1} parent=11 // pred_fallthru
          _
        // Predicated region
        $region65: #{tpu_custom_call.1} parent=11 // pred_check
          %p494 = pneg %p376
        $region66: #{tpu_custom_call.1} parent=11 // pred_check_branch
          %496 = sbr.rel (%p494) target = $region68
        $region67: #{tpu_custom_call.1} parent=11 // pred_region
          _
        $region68: #{tpu_custom_call.1} parent=11 // pred_fallthru
          _
      $region12: #{tpu_custom_call.1} parent=5 // pred_fallthru
        _
      %p497 = scmp.lt.s32.totalorder %s30, 2
      // Predicated region
      $region69: #{tpu_custom_call.1} parent=5 // pred_check
        %p498 = pneg %p497
      $region70: #{tpu_custom_call.1} parent=5 // pred_check_branch
        %500 = sbr.rel (%p498) target = $region72
      $region71: #{tpu_custom_call.1} parent=5 // pred_region
        // Predicated region
        $region73: #{tpu_custom_call.1} parent=71 // pred_check
          %p501 = pneg %p50
        $region74: #{tpu_custom_call.1} parent=71 // pred_check_branch
          %503 = sbr.rel (%p501) target = $region76
        $region75: #{tpu_custom_call.1} parent=71 // pred_region
          %p504 = scmp.lt.s32.totalorder %s30, 1
          %s505 = scalar_select %p504, %s30, 1
          %s506 = smul.addr %s505, 8
          %s507 = scalar_lea.vmem %s0, %s506
        $region76: #{tpu_custom_call.1} parent=71 // pred_fallthru
          _
        // Predicated region
        $region77: #{tpu_custom_call.1} parent=71 // pred_check
          %p508 = pneg %p76
        $region78: #{tpu_custom_call.1} parent=71 // pred_check_branch
          %510 = sbr.rel (%p508) target = $region80
        $region79: #{tpu_custom_call.1} parent=71 // pred_region
          %s511 = sand.u32 %s66, 1
          %s512 = scalar_lea.sflag [#allocation3], %s511
          %s513 = sand.u32 %s66, 1
          %s514 = scalar_lea.vmem [#allocation2], %s513
          %516 = vsyncadd %s512, 0
          %s517 = scalar_lea.hbm %s1, %s30
          %s519 = sshll.u32 %s517, 4
          %s520 = int_to_ptr.hbm [resolvable:$true] %s519
          %s521 = sshll.u32 %s514, 4
          %s522 = int_to_ptr.vmem [resolvable:$true] %s521
          %524 = dma.hbm_to_vmem [thread:$0]  %s520, 16, %s522, %s512
        $region80: #{tpu_custom_call.1} parent=71 // pred_fallthru
          _
      $region72: #{tpu_custom_call.1} parent=5 // pred_fallthru
        _
      %p525 = scmp.le.s32.totalorder 1, %s30
      %p526 = scmp.lt.s32.totalorder %s30, 3
      %p527 = pnand %p525, %p526
      %p528 = pneg %p527
      // Predicated region
      $region81: #{tpu_custom_call.1} parent=5 // pred_check
        _
      $region82: #{tpu_custom_call.1} parent=5 // pred_check_branch
        %530 = sbr.rel (%p527) target = $region84
      $region83: #{tpu_custom_call.1} parent=5 // pred_region
        %s531 = ssub.s32 %s30, 1
        %s532 = sand.u32 %s69, 1
        %s533 = scalar_lea.sflag [#allocation3], %s532
        %s534 = sand.u32 %s69, 1
        %s535 = scalar_lea.vmem [#allocation2], %s534
        // Predicated region
        $region85: #{tpu_custom_call.1} parent=83 // pred_check
          %p536 = pneg %p82
        $region86: #{tpu_custom_call.1} parent=83 // pred_check_branch
          %538 = sbr.rel (%p536) target = $region88
        $region87: #{tpu_custom_call.1} parent=83 // pred_region
          %540 = dma.done %s533, 16
        $region88: #{tpu_custom_call.1} parent=83 // pred_fallthru
          _
        // Predicated region
        $region89: #{tpu_custom_call.1} parent=83 // pred_check
          %p541 = pneg %p166
        $region90: #{tpu_custom_call.1} parent=83 // pred_check_branch
          %543 = sbr.rel (%p541) target = $region92
        $region91: #{tpu_custom_call.1} parent=83 // pred_region
          %545 = dma.done [#allocation6], 16
        $region92: #{tpu_custom_call.1} parent=83 // pred_fallthru
          _
        // Predicated region
        $region93: #{tpu_custom_call.1} parent=83 // pred_check
          %p546 = pneg %p187
        $region94: #{tpu_custom_call.1} parent=83 // pred_check_branch
          %548 = sbr.rel (%p546) target = $region96
        $region95: #{tpu_custom_call.1} parent=83 // pred_region
          %550 = dma.done [#allocation6], 256
        $region96: #{tpu_custom_call.1} parent=83 // pred_fallthru
          _
        // Predicated region
        $region97: #{tpu_custom_call.1} parent=83 // pred_check
          %p551 = pneg %p208
        $region98: #{tpu_custom_call.1} parent=83 // pred_check_branch
          %553 = sbr.rel (%p551) target = $region100
        $region99: #{tpu_custom_call.1} parent=83 // pred_region
          %555 = dma.done [#allocation9], 16
        $region100: #{tpu_custom_call.1} parent=83 // pred_fallthru
          _
        // Predicated region
        $region101: #{tpu_custom_call.1} parent=83 // pred_check
          %p556 = pneg %p250
        $region102: #{tpu_custom_call.1} parent=83 // pred_check_branch
          %558 = sbr.rel (%p556) target = $region104
        $region103: #{tpu_custom_call.1} parent=83 // pred_region
          %560 = dma.done [#allocation9], 16
        $region104: #{tpu_custom_call.1} parent=83 // pred_fallthru
          _
        %p561 = scmp.lt.s32.totalorder %s35, 1
        %s562 = scalar_select %p561, %s35, 1
        %s563 = smul.addr %s562, 8
        %s564 = scalar_lea.vmem %s0, %s563
        %p565 = pneg %p56
        %p566 = pneg %p53
        %s567 = sand.u32 %s69, 1
        %s568 = scalar_lea.sflag [#allocation3], %s567
        %s569 = sand.u32 %s69, 1
        %s570 = scalar_lea.vmem [#allocation2], %s569
        %p571 = pneg %p82
        %p572 = pneg %p79
        %p573 = pneg %p103
        %p574 = pneg %p100
        %p575 = pneg %p124
        %p576 = pneg %p121
        %p577 = pneg %p145
        %p578 = pneg %p142
        %p579 = pneg %p166
        %p580 = pneg %p163
        %p581 = pneg %p187
        %p582 = pneg %p184
        %p583 = pneg %p208
        %p584 = pneg %p205
        %p585 = pneg %p229
        %p586 = pneg %p226
        %p587 = pneg %p250
        %p588 = pneg %p247
        %p589 = pneg %p271
        %p590 = pneg %p268
        %p591 = pneg %p292
        %p592 = pneg %p289
        %p593 = pneg %p313
        %p594 = pneg %p310
        %p595 = pneg %p334
        %p596 = pneg %p331
        %p597 = pneg %p355
        %p598 = pneg %p352
        %p599 = pneg %p376
        %p600 = pneg %p373
        %p601 = pneg %p402
        %p602 = pneg %p399
        %s603 = sand.u32 %s389, 1
        %s604 = scalar_lea.sflag [#allocation4], %s603
        %s605 = sand.u32 %s389, 1
        %s606 = smul.addr %s605, 8
        %s607 = scalar_lea.vmem [#allocation11], %s606
        %p608 = scmp.lt.s32.totalorder %s35, 1
        %s609 = scalar_select %p608, %s35, 1
        %s610 = smul.addr %s609, 8
        %s611 = scalar_lea.vmem %s0, %s610
        %v613 = vld [vmem:[%s611] sm:$0xff]
        %v614 = vld [vmem:[%s535] sm:$0x1]
        %v615 = vpack.c.bf16 %v613, %v613
        %v616 = vld [vmem:[%s2] sm:$0xf]
        %v617 = vld [vmem:[%s2 + $0x4] sm:$0xf]
        %v618 = vld [vmem:[%s2 + $0x8] sm:$0xf]
        %v619 = vld [vmem:[%s2 + $0xc] sm:$0xf]
        %v620 = vld [vmem:[%s3] sm:$0x1]
        %v622 = vperm.slane %v620, 0
        %v628 = vunpack.c.l.b16 %v616
        %v629 = vunpack.c.l.b16 %v617
        %v630 = vunpack.c.l.b16 %v618
        %v631 = vunpack.c.l.b16 %v619
        %v632 = vpack.c.b16 %v629, %v628
        %v633 = vpack.c.b16 %v631, %v630
        %vm636 = vcmask 261120
        %v638 = vsel %vm636, %v615, 0
        %640 = vmatpush.bf16.msra.mxu0 0
        %641 = vmatpush.bf16.msra.mxu0 0
        %642 = vmatpush.bf16.msra.mxu0 0
        %643 = vmatpush.bf16.msra.mxu0 0
        %644 = vmatpush.bf16.msra.mxu0 0
        %645 = vmatpush.bf16.msra.mxu0 0
        %646 = vmatpush.bf16.msra.mxu0 %v633
        %647 = vmatpush.bf16.msra.mxu0 %v632
        %648 = vmatmul.bf16.gmra.mxu0 %v638
        %v649 = vpop.f32.mrf.mxu0
        %v650 = vadd.f32 %v622, %v649
        %v651 = vpop.f32.mrf.mxu0
        %652 = vdwg.mxu0
        %653 = vxpose.xlu0.b32.start [1/16] %v650, 128
        %654 = vxpose.xlu0.b32.cont [2/16] 0.0, 128
        %655 = vxpose.xlu0.b32.cont [3/16] 0.0, 128
        %656 = vxpose.xlu0.b32.cont [4/16] 0.0, 128
        %657 = vxpose.xlu0.b32.cont [5/16] 0.0, 128
        %658 = vxpose.xlu0.b32.cont [6/16] 0.0, 128
        %659 = vxpose.xlu0.b32.cont [7/16] 0.0, 128
        %660 = vxpose.xlu0.b32.cont [8/16] 0.0, 128
        %661 = vxpose.xlu0.b32.cont [9/16] 0.0, 128
        %662 = vxpose.xlu0.b32.cont [10/16] 0.0, 128
        %663 = vxpose.xlu0.b32.cont [11/16] 0.0, 128
        %664 = vxpose.xlu0.b32.cont [12/16] 0.0, 128
        %665 = vxpose.xlu0.b32.cont [13/16] 0.0, 128
        %666 = vxpose.xlu0.b32.cont [14/16] 0.0, 128
        %667 = vxpose.xlu0.b32.cont [15/16] 0.0, 128
        %668 = vxpose.xlu0.b32.end [16/16] 0.0, 128
        %v669 = vpop.trf.xlu0
        %v670 = vpop.trf.xlu0
        %v671 = vpop.trf.xlu0
        %v672 = vpop.trf.xlu0
        %v673 = vpop.trf.xlu0
        %v674 = vpop.trf.xlu0
        %v675 = vpop.trf.xlu0
        %v676 = vpop.trf.xlu0
        %v677 = vpop.trf.xlu0
        %v678 = vpop.trf.xlu0
        %v679 = vpop.trf.xlu0
        %v680 = vpop.trf.xlu0
        %v681 = vpop.trf.xlu0
        %v682 = vpop.trf.xlu0
        %v683 = vpop.trf.xlu0
        %v684 = vpop.trf.xlu0
        %685 = vxpose.xlu0.b32.start [1/16] %v669, 128
        %686 = vxpose.xlu0.b32.cont [2/16] 0.0, 128
        %687 = vxpose.xlu0.b32.cont [3/16] 0.0, 128
        %688 = vxpose.xlu0.b32.cont [4/16] 0.0, 128
        %689 = vxpose.xlu0.b32.cont [5/16] 0.0, 128
        %690 = vxpose.xlu0.b32.cont [6/16] 0.0, 128
        %691 = vxpose.xlu0.b32.cont [7/16] 0.0, 128
        %692 = vxpose.xlu0.b32.cont [8/16] 0.0, 128
        %693 = vxpose.xlu0.b32.cont [9/16] 0.0, 128
        %694 = vxpose.xlu0.b32.cont [10/16] 0.0, 128
        %695 = vxpose.xlu0.b32.cont [11/16] 0.0, 128
        %696 = vxpose.xlu0.b32.cont [12/16] 0.0, 128
        %697 = vxpose.xlu0.b32.cont [13/16] 0.0, 128
        %698 = vxpose.xlu0.b32.cont [14/16] 0.0, 128
        %699 = vxpose.xlu0.b32.cont [15/16] 0.0, 128
        %700 = vxpose.xlu0.b32.end [16/16] 0.0, 128
        %v701 = vpop.trf.xlu0
        %v702 = vpop.trf.xlu0
        %v703 = vpop.trf.xlu0
        %v704 = vpop.trf.xlu0
        %v705 = vpop.trf.xlu0
        %v706 = vpop.trf.xlu0
        %v707 = vpop.trf.xlu0
        %v708 = vpop.trf.xlu0
        %v709 = vpop.trf.xlu0
        %v710 = vpop.trf.xlu0
        %v711 = vpop.trf.xlu0
        %v712 = vpop.trf.xlu0
        %v713 = vpop.trf.xlu0
        %v714 = vpop.trf.xlu0
        %v715 = vpop.trf.xlu0
        %v716 = vpop.trf.xlu0
        %717 = vxpose.xlu0.b32.start [1/16] %v670, 128
        %718 = vxpose.xlu0.b32.cont [2/16] 0.0, 128
        %719 = vxpose.xlu0.b32.cont [3/16] 0.0, 128
        %720 = vxpose.xlu0.b32.cont [4/16] 0.0, 128
        %721 = vxpose.xlu0.b32.cont [5/16] 0.0, 128
        %722 = vxpose.xlu0.b32.cont [6/16] 0.0, 128
        %723 = vxpose.xlu0.b32.cont [7/16] 0.0, 128
        %724 = vxpose.xlu0.b32.cont [8/16] 0.0, 128
        %725 = vxpose.xlu0.b32.cont [9/16] 0.0, 128
        %726 = vxpose.xlu0.b32.cont [10/16] 0.0, 128
        %727 = vxpose.xlu0.b32.cont [11/16] 0.0, 128
        %728 = vxpose.xlu0.b32.cont [12/16] 0.0, 128
        %729 = vxpose.xlu0.b32.cont [13/16] 0.0, 128
        %730 = vxpose.xlu0.b32.cont [14/16] 0.0, 128
        %731 = vxpose.xlu0.b32.cont [15/16] 0.0, 128
        %732 = vxpose.xlu0.b32.end [16/16] 0.0, 128
        %v733 = vpop.trf.xlu0
        %v734 = vpop.trf.xlu0
        %v735 = vpop.trf.xlu0
        %v736 = vpop.trf.xlu0
        %v737 = vpop.trf.xlu0
        %v738 = vpop.trf.xlu0
        %v739 = vpop.trf.xlu0
        %v740 = vpop.trf.xlu0
        %v741 = vpop.trf.xlu0
        %v742 = vpop.trf.xlu0
        %v743 = vpop.trf.xlu0
        %v744 = vpop.trf.xlu0
        %v745 = vpop.trf.xlu0
        %v746 = vpop.trf.xlu0
        %v747 = vpop.trf.xlu0
        %v748 = vpop.trf.xlu0
        %749 = vxpose.xlu0.b32.start [1/16] %v671, 128
        %750 = vxpose.xlu0.b32.cont [2/16] 0.0, 128
        %751 = vxpose.xlu0.b32.cont [3/16] 0.0, 128
        %752 = vxpose.xlu0.b32.cont [4/16] 0.0, 128
        %753 = vxpose.xlu0.b32.cont [5/16] 0.0, 128
        %754 = vxpose.xlu0.b32.cont [6/16] 0.0, 128
        %755 = vxpose.xlu0.b32.cont [7/16] 0.0, 128
        %756 = vxpose.xlu0.b32.cont [8/16] 0.0, 128
        %757 = vxpose.xlu0.b32.cont [9/16] 0.0, 128
        %758 = vxpose.xlu0.b32.cont [10/16] 0.0, 128
        %759 = vxpose.xlu0.b32.cont [11/16] 0.0, 128
        %760 = vxpose.xlu0.b32.cont [12/16] 0.0, 128
        %761 = vxpose.xlu0.b32.cont [13/16] 0.0, 128
        %762 = vxpose.xlu0.b32.cont [14/16] 0.0, 128
        %763 = vxpose.xlu0.b32.cont [15/16] 0.0, 128
        %764 = vxpose.xlu0.b32.end [16/16] 0.0, 128
        %v765 = vpop.trf.xlu0
        %v766 = vpop.trf.xlu0
        %v767 = vpop.trf.xlu0
        %v768 = vpop.trf.xlu0
        %v769 = vpop.trf.xlu0
        %v770 = vpop.trf.xlu0
        %v771 = vpop.trf.xlu0
        %v772 = vpop.trf.xlu0
        %v773 = vpop.trf.xlu0
        %v774 = vpop.trf.xlu0
        %v775 = vpop.trf.xlu0
        %v776 = vpop.trf.xlu0
        %v777 = vpop.trf.xlu0
        %v778 = vpop.trf.xlu0
        %v779 = vpop.trf.xlu0
        %v780 = vpop.trf.xlu0
        %781 = vxpose.xlu0.b32.start [1/16] %v672, 128
        %782 = vxpose.xlu0.b32.cont [2/16] 0.0, 128
        %783 = vxpose.xlu0.b32.cont [3/16] 0.0, 128
        %784 = vxpose.xlu0.b32.cont [4/16] 0.0, 128
        %785 = vxpose.xlu0.b32.cont [5/16] 0.0, 128
        %786 = vxpose.xlu0.b32.cont [6/16] 0.0, 128
        %787 = vxpose.xlu0.b32.cont [7/16] 0.0, 128
        %788 = vxpose.xlu0.b32.cont [8/16] 0.0, 128
        %789 = vxpose.xlu0.b32.cont [9/16] 0.0, 128
        %790 = vxpose.xlu0.b32.cont [10/16] 0.0, 128
        %791 = vxpose.xlu0.b32.cont [11/16] 0.0, 128
        %792 = vxpose.xlu0.b32.cont [12/16] 0.0, 128
        %793 = vxpose.xlu0.b32.cont [13/16] 0.0, 128
        %794 = vxpose.xlu0.b32.cont [14/16] 0.0, 128
        %795 = vxpose.xlu0.b32.cont [15/16] 0.0, 128
        %796 = vxpose.xlu0.b32.end [16/16] 0.0, 128
        %v797 = vpop.trf.xlu0
        %v798 = vpop.trf.xlu0
        %v799 = vpop.trf.xlu0
        %v800 = vpop.trf.xlu0
        %v801 = vpop.trf.xlu0
        %v802 = vpop.trf.xlu0
        %v803 = vpop.trf.xlu0
        %v804 = vpop.trf.xlu0
        %v805 = vpop.trf.xlu0
        %v806 = vpop.trf.xlu0
        %v807 = vpop.trf.xlu0
        %v808 = vpop.trf.xlu0
        %v809 = vpop.trf.xlu0
        %v810 = vpop.trf.xlu0
        %v811 = vpop.trf.xlu0
        %v812 = vpop.trf.xlu0
        %v814 = vperm.slane %v614, 0
        %vm816 = vcmask 64512
        %v818 = vsel %vm816, %v701, 0
        %820 = vmatpush.msra.mxu0 0.0
        %821 = vmatpush.msra.mxu0 0.0
        %822 = vmatpush.msra.mxu0 0.0
        %823 = vmatpush.msra.mxu0 0.0
        %824 = vmatpush.msra.mxu0 0.0
        %825 = vmatpush.msra.mxu0 0.0
        %826 = vmatpush.msra.mxu0 0.0
        %827 = vmatpush.msra.mxu0 0.0
        %828 = vmatpush.msra.mxu0 0.0
        %829 = vmatpush.msra.mxu0 0.0
        %830 = vmatpush.msra.mxu0 0.0
        %831 = vmatpush.msra.mxu0 0.0
        %832 = vmatpush.msra.mxu0 0.0
        %833 = vmatpush.msra.mxu0 0.0
        %834 = vmatpush.msra.mxu0 0.0
        %835 = vmatpush.msra.mxu0 %v673
        %836 = vmatmul.f32.gmra.mxu0 %v818
        %v837 = vpop.f32.mrf.mxu0
        %v838 = vadd.f32 %v814, %v837
        %839 = vdwg.mxu0
        %v841 = vsel %vm816, %v733, 0
        %843 = vmatpush.msra.mxu0 0.0
        %844 = vmatpush.msra.mxu0 0.0
        %845 = vmatpush.msra.mxu0 0.0
        %846 = vmatpush.msra.mxu0 0.0
        %847 = vmatpush.msra.mxu0 0.0
        %848 = vmatpush.msra.mxu0 0.0
        %849 = vmatpush.msra.mxu0 0.0
        %850 = vmatpush.msra.mxu0 0.0
        %851 = vmatpush.msra.mxu0 0.0
        %852 = vmatpush.msra.mxu0 0.0
        %853 = vmatpush.msra.mxu0 0.0
        %854 = vmatpush.msra.mxu0 0.0
        %855 = vmatpush.msra.mxu0 0.0
        %856 = vmatpush.msra.mxu0 0.0
        %857 = vmatpush.msra.mxu0 0.0
        %858 = vmatpush.msra.mxu0 %v674
        %859 = vmatmul.f32.gmra.mxu0 %v841
        %v860 = vpop.f32.mrf.mxu0
        %v861 = vadd.f32 %v814, %v860
        %862 = vdwg.mxu0
        %v864 = vsel %vm816, %v765, 0
        %866 = vmatpush.msra.mxu0 0.0
        %867 = vmatpush.msra.mxu0 0.0
        %868 = vmatpush.msra.mxu0 0.0
        %869 = vmatpush.msra.mxu0 0.0
        %870 = vmatpush.msra.mxu0 0.0
        %871 = vmatpush.msra.mxu0 0.0
        %872 = vmatpush.msra.mxu0 0.0
        %873 = vmatpush.msra.mxu0 0.0
        %874 = vmatpush.msra.mxu0 0.0
        %875 = vmatpush.msra.mxu0 0.0
        %876 = vmatpush.msra.mxu0 0.0
        %877 = vmatpush.msra.mxu0 0.0
        %878 = vmatpush.msra.mxu0 0.0
        %879 = vmatpush.msra.mxu0 0.0
        %880 = vmatpush.msra.mxu0 0.0
        %881 = vmatpush.msra.mxu0 %v675
        %882 = vmatmul.f32.gmra.mxu0 %v864
        %v883 = vpop.f32.mrf.mxu0
        %v884 = vadd.f32 %v814, %v883
        %885 = vdwg.mxu0
        %v887 = vsel %vm816, %v797, 0
        %889 = vmatpush.msra.mxu0 0.0
        %890 = vmatpush.msra.mxu0 0.0
        %891 = vmatpush.msra.mxu0 0.0
        %892 = vmatpush.msra.mxu0 0.0
        %893 = vmatpush.msra.mxu0 0.0
        %894 = vmatpush.msra.mxu0 0.0
        %895 = vmatpush.msra.mxu0 0.0
        %896 = vmatpush.msra.mxu0 0.0
        %897 = vmatpush.msra.mxu0 0.0
        %898 = vmatpush.msra.mxu0 0.0
        %899 = vmatpush.msra.mxu0 0.0
        %900 = vmatpush.msra.mxu0 0.0
        %901 = vmatpush.msra.mxu0 0.0
        %902 = vmatpush.msra.mxu0 0.0
        %903 = vmatpush.msra.mxu0 0.0
        %904 = vmatpush.msra.mxu0 %v676
        %905 = vmatmul.f32.gmra.mxu0 %v887
        %v906 = vpop.f32.mrf.mxu0
        %v907 = vadd.f32 %v814, %v906
        %908 = vdwg.mxu0
        %v909 = vsel %vm816, %v838, -inf
        %910 = vmax.xlane.f32.xlu0 %v909
        %v911 = vpop.xlane.xlu0 %910
        %v912 = vsel %vm816, %v861, -inf
        %913 = vmax.xlane.f32.xlu0 %v912
        %v914 = vpop.xlane.xlu0 %913
        %v915 = vsel %vm816, %v884, -inf
        %916 = vmax.xlane.f32.xlu0 %v915
        %v917 = vpop.xlane.xlu0 %916
        %v918 = vsel %vm816, %v907, -inf
        %919 = vmax.xlane.f32.xlu0 %v918
        %v920 = vpop.xlane.xlu0 %919
        %v921 = vsub.f32 %v838, %v911
        %v922 = vsub.f32 %v861, %v914
        %v923 = vsub.f32 %v884, %v917
        %v924 = vsub.f32 %v907, %v920
        %v925 = vmul.f32 %v921, 1.442695
        %v926 = vpow.pop %v925
        %v927 = vmul.f32 %v922, 1.442695
        %v928 = vpow.pop %v927
        %v929 = vmul.f32 %v923, 1.442695
        %v930 = vpow.pop %v929
        %v931 = vmul.f32 %v924, 1.442695
        %v932 = vpow.pop %v931
        %v933 = vsel %vm816, %v926, 0.0
        %934 = vadd.xlane.f32.xlu0 %v933
        %v935 = vpop.xlane.xlu0 %934
        %v936 = vsel %vm816, %v928, 0.0
        %937 = vadd.xlane.f32.xlu0 %v936
        %v938 = vpop.xlane.xlu0 %937
        %v939 = vsel %vm816, %v930, 0.0
        %940 = vadd.xlane.f32.xlu0 %v939
        %v941 = vpop.xlane.xlu0 %940
        %v942 = vsel %vm816, %v932, 0.0
        %943 = vadd.xlane.f32.xlu0 %v942
        %v944 = vpop.xlane.xlu0 %943
        %v945 = vrcp.pop %v935
        %v946 = vrcp.pop %v938
        %v947 = vrcp.pop %v941
        %v948 = vrcp.pop %v944
        %v949 = vmul.f32 %v926, %v945
        %v950 = vmul.f32 %v928, %v946
        %v951 = vmul.f32 %v930, %v947
        %v952 = vmul.f32 %v932, %v948
        %v954 = vsel %vm816, %v677, 0
        %v957 = vsel %vm816, %v949, 0
        %959 = vmatpush.xpose.msra.mxu0 0.0
        %960 = vmatpush.xpose.msra.mxu0 0.0
        %961 = vmatpush.xpose.msra.mxu0 0.0
        %962 = vmatpush.xpose.msra.mxu0 0.0
        %963 = vmatpush.xpose.msra.mxu0 0.0
        %964 = vmatpush.xpose.msra.mxu0 0.0
        %965 = vmatpush.xpose.msra.mxu0 0.0
        %966 = vmatpush.xpose.msra.mxu0 0.0
        %967 = vmatpush.xpose.msra.mxu0 0.0
        %968 = vmatpush.xpose.msra.mxu0 0.0
        %969 = vmatpush.xpose.msra.mxu0 0.0
        %970 = vmatpush.xpose.msra.mxu0 0.0
        %971 = vmatpush.xpose.msra.mxu0 0.0
        %972 = vmatpush.xpose.msra.mxu0 0.0
        %973 = vmatpush.xpose.msra.mxu0 0.0
        %974 = vmatpush.xpose.msra.mxu0 %v957
        %975 = vmatmul.f32.gmra.mxu0 %v954
        %v976 = vpop.f32.mrf.mxu0
        %v977 = vadd.f32 0.0, %v976
        %978 = vdwg.mxu0
        %v980 = vsel %vm816, %v678, 0
        %v983 = vsel %vm816, %v950, 0
        %985 = vmatpush.xpose.msra.mxu0 0.0
        %986 = vmatpush.xpose.msra.mxu0 0.0
        %987 = vmatpush.xpose.msra.mxu0 0.0
        %988 = vmatpush.xpose.msra.mxu0 0.0
        %989 = vmatpush.xpose.msra.mxu0 0.0
        %990 = vmatpush.xpose.msra.mxu0 0.0
        %991 = vmatpush.xpose.msra.mxu0 0.0
        %992 = vmatpush.xpose.msra.mxu0 0.0
        %993 = vmatpush.xpose.msra.mxu0 0.0
        %994 = vmatpush.xpose.msra.mxu0 0.0
        %995 = vmatpush.xpose.msra.mxu0 0.0
        %996 = vmatpush.xpose.msra.mxu0 0.0
        %997 = vmatpush.xpose.msra.mxu0 0.0
        %998 = vmatpush.xpose.msra.mxu0 0.0
        %999 = vmatpush.xpose.msra.mxu0 0.0
        %1000 = vmatpush.xpose.msra.mxu0 %v983
        %1001 = vmatmul.f32.gmra.mxu0 %v980
        %v1002 = vpop.f32.mrf.mxu0
        %v1003 = vadd.f32 0.0, %v1002
        %1004 = vdwg.mxu0
        %v1006 = vsel %vm816, %v679, 0
        %v1009 = vsel %vm816, %v951, 0
        %1011 = vmatpush.xpose.msra.mxu0 0.0
        %1012 = vmatpush.xpose.msra.mxu0 0.0
        %1013 = vmatpush.xpose.msra.mxu0 0.0
        %1014 = vmatpush.xpose.msra.mxu0 0.0
        %1015 = vmatpush.xpose.msra.mxu0 0.0
        %1016 = vmatpush.xpose.msra.mxu0 0.0
        %1017 = vmatpush.xpose.msra.mxu0 0.0
        %1018 = vmatpush.xpose.msra.mxu0 0.0
        %1019 = vmatpush.xpose.msra.mxu0 0.0
        %1020 = vmatpush.xpose.msra.mxu0 0.0
        %1021 = vmatpush.xpose.msra.mxu0 0.0
        %1022 = vmatpush.xpose.msra.mxu0 0.0
        %1023 = vmatpush.xpose.msra.mxu0 0.0
        %1024 = vmatpush.xpose.msra.mxu0 0.0
        %1025 = vmatpush.xpose.msra.mxu0 0.0
        %1026 = vmatpush.xpose.msra.mxu0 %v1009
        %1027 = vmatmul.f32.gmra.mxu0 %v1006
        %v1028 = vpop.f32.mrf.mxu0
        %v1029 = vadd.f32 0.0, %v1028
        %1030 = vdwg.mxu0
        %v1032 = vsel %vm816, %v680, 0
        %v1035 = vsel %vm816, %v952, 0
        %1037 = vmatpush.xpose.msra.mxu0 0.0
        %1038 = vmatpush.xpose.msra.mxu0 0.0
        %1039 = vmatpush.xpose.msra.mxu0 0.0
        %1040 = vmatpush.xpose.msra.mxu0 0.0
        %1041 = vmatpush.xpose.msra.mxu0 0.0
        %1042 = vmatpush.xpose.msra.mxu0 0.0
        %1043 = vmatpush.xpose.msra.mxu0 0.0
        %1044 = vmatpush.xpose.msra.mxu0 0.0
        %1045 = vmatpush.xpose.msra.mxu0 0.0
        %1046 = vmatpush.xpose.msra.mxu0 0.0
        %1047 = vmatpush.xpose.msra.mxu0 0.0
        %1048 = vmatpush.xpose.msra.mxu0 0.0
        %1049 = vmatpush.xpose.msra.mxu0 0.0
        %1050 = vmatpush.xpose.msra.mxu0 0.0
        %1051 = vmatpush.xpose.msra.mxu0 0.0
        %1052 = vmatpush.xpose.msra.mxu0 %v1035
        %1053 = vmatmul.f32.gmra.mxu0 %v1032
        %v1054 = vpop.f32.mrf.mxu0
        %v1055 = vadd.f32 0.0, %v1054
        %1056 = vdwg.mxu0
        %1057 = vxpose.xlu0.b32.start [1/16] %v977, 128
        %1058 = vxpose.xlu0.b32.cont [2/16] %v1003, 128
        %1059 = vxpose.xlu0.b32.cont [3/16] %v1029, 128
        %1060 = vxpose.xlu0.b32.cont [4/16] %v1055, 128
        %1061 = vxpose.xlu0.b32.cont [5/16] 0.0, 128
        %1062 = vxpose.xlu0.b32.cont [6/16] 0.0, 128
        %1063 = vxpose.xlu0.b32.cont [7/16] 0.0, 128
        %1064 = vxpose.xlu0.b32.cont [8/16] 0.0, 128
        %1065 = vxpose.xlu0.b32.cont [9/16] 0.0, 128
        %1066 = vxpose.xlu0.b32.cont [10/16] 0.0, 128
        %1067 = vxpose.xlu0.b32.cont [11/16] 0.0, 128
        %1068 = vxpose.xlu0.b32.cont [12/16] 0.0, 128
        %1069 = vxpose.xlu0.b32.cont [13/16] 0.0, 128
        %1070 = vxpose.xlu0.b32.cont [14/16] 0.0, 128
        %1071 = vxpose.xlu0.b32.cont [15/16] 0.0, 128
        %1072 = vxpose.xlu0.b32.end [16/16] 0.0, 128
        %v1073 = vpop.trf.xlu0
        %v1074 = vpop.trf.xlu0
        %v1075 = vpop.trf.xlu0
        %v1076 = vpop.trf.xlu0
        %v1077 = vpop.trf.xlu0
        %v1078 = vpop.trf.xlu0
        %v1079 = vpop.trf.xlu0
        %v1080 = vpop.trf.xlu0
        %v1081 = vpop.trf.xlu0
        %v1082 = vpop.trf.xlu0
        %v1083 = vpop.trf.xlu0
        %v1084 = vpop.trf.xlu0
        %v1085 = vpop.trf.xlu0
        %v1086 = vpop.trf.xlu0
        %v1087 = vpop.trf.xlu0
        %v1088 = vpop.trf.xlu0
        %v1089 = vpack.c.bf16 %v1073, %v1073
        %v1090 = vld [vmem:[%s4] sm:$0xf]
        %v1091 = vld [vmem:[%s4 + $0x4] sm:$0xf]
        %v1092 = vld [vmem:[%s4 + $0x8] sm:$0xf]
        %v1093 = vld [vmem:[%s4 + $0xc] sm:$0xf]
        %v1094 = vld [vmem:[#allocation5] sm:$0x1]
        %v1096 = vperm.slane %v1094, 0
        %v1102 = vunpack.c.l.b16 %v1090
        %v1103 = vunpack.c.l.b16 %v1091
        %v1104 = vunpack.c.l.b16 %v1092
        %v1105 = vunpack.c.l.b16 %v1093
        %v1106 = vpack.c.b16 %v1103, %v1102
        %v1107 = vpack.c.b16 %v1105, %v1104
        %v1111 = vsel %vm636, %v1089, 0
        %1113 = vmatpush.bf16.msra.mxu0 0
        %1114 = vmatpush.bf16.msra.mxu0 0
        %1115 = vmatpush.bf16.msra.mxu0 0
        %1116 = vmatpush.bf16.msra.mxu0 0
        %1117 = vmatpush.bf16.msra.mxu0 0
        %1118 = vmatpush.bf16.msra.mxu0 0
        %1119 = vmatpush.bf16.msra.mxu0 %v1107
        %1120 = vmatpush.bf16.msra.mxu0 %v1106
        %1121 = vmatmul.bf16.gmra.mxu0 %v1111
        %v1122 = vpop.f32.mrf.mxu0
        %v1123 = vadd.f32 %v1096, %v1122
        %v1124 = vpop.f32.mrf.mxu0
        %1125 = vdwg.mxu0
        %v1126 = vadd.f32 %v613, %v1123
        %v1127 = vsel %vm636, %v1126, 0.0
        %1128 = vadd.xlane.f32.xlu0 %v1127
        %v1129 = vpop.xlane.xlu0 %1128
        %v1130 = vrcp.pop 32.0
        %v1131 = vmul.f32 32.0, %v1130
        %v1132 = vsub.f32 1.0, %v1131
        %v1133 = vmul.f32 %v1130, %v1132
        %v1134 = vadd.f32 %v1130, %v1133
        %vm1135 = vweird.f32 %v1130
        %v1136 = vsel %vm1135, %v1130, %v1134
        %v1137 = vmul.f32 %v1129, %v1136
        %v1138 = vmul.f32 %v1126, %v1126
        %v1139 = vsel %vm636, %v1138, 0.0
        %1140 = vadd.xlane.f32.xlu0 %v1139
        %v1141 = vpop.xlane.xlu0 %1140
        %v1142 = vmul.f32 %v1141, %v1136
        %v1143 = vsub.f32 %v1126, %v1137
        %v1144 = vmul.f32 %v1137, %v1137
        %v1145 = vsub.f32 %v1142, %v1144
        %v1146 = vadd.f32 %v1145, 1e-05
        %v1147 = vrsqrt.pop %v1146
        %v1148 = vmul.f32 %v1147, %v1146
        %v1149 = vmul.f32 %v1148, %v1147
        %v1150 = vmul.f32 0.5, %v1149
        %v1151 = vsub.f32 1.5, %v1150
        %v1152 = vmul.f32 %v1147, %v1151
        %vm1153 = vweird.f32 %v1146
        %vm1154 = vweird.f32 %v1147
        %vm1155 = vmor %vm1153, %vm1154
        %v1156 = vsel %vm1155, %v1147, %v1152
        %v1157 = vmul.f32 %v1143, %v1156
        %v1158 = vpack.c.bf16 %v1157, %v1157
        %v1159 = vld [vmem:[#allocation7] sm:$0xf]
        %v1160 = vld [vmem:[#allocation7 + $0x4] sm:$0xf]
        %v1161 = vld [vmem:[#allocation7 + $0x8] sm:$0xf]
        %v1162 = vld [vmem:[#allocation7 + $0xc] sm:$0xf]
        %v1163 = vld [vmem:[#allocation8] sm:$0x1]
        %v1165 = vperm.slane %v1163, 0
        %v1171 = vunpack.c.l.b16 %v1159
        %v1172 = vunpack.c.l.b16 %v1160
        %v1173 = vunpack.c.l.b16 %v1161
        %v1174 = vunpack.c.l.b16 %v1162
        %v1175 = vpack.c.b16 %v1172, %v1171
        %v1176 = vpack.c.b16 %v1174, %v1173
        %v1180 = vsel %vm636, %v1158, 0
        %1182 = vmatpush.bf16.msra.mxu0 0
        %1183 = vmatpush.bf16.msra.mxu0 0
        %1184 = vmatpush.bf16.msra.mxu0 0
        %1185 = vmatpush.bf16.msra.mxu0 0
        %1186 = vmatpush.bf16.msra.mxu0 0
        %1187 = vmatpush.bf16.msra.mxu0 0
        %1188 = vmatpush.bf16.msra.mxu0 %v1176
        %1189 = vmatpush.bf16.msra.mxu0 %v1175
        %1190 = vmatmul.bf16.gmra.mxu0 %v1180
        %v1191 = vpop.f32.mrf.mxu0
        %v1192 = vadd.f32 %v1165, %v1191
        %v1193 = vpop.f32.mrf.mxu0
        %1194 = vdwg.mxu0
        %v1195 = vmax.f32 %v1192, 0.0
        %v1196 = vpack.c.bf16 %v1195, %v1195
        %v1197 = vld [vmem:[%s8] sm:$0xf]
        %v1198 = vld [vmem:[%s8 + $0x4] sm:$0xf]
        %v1199 = vld [vmem:[%s8 + $0x8] sm:$0xf]
        %v1200 = vld [vmem:[%s8 + $0xc] sm:$0xf]
        %v1201 = vld [vmem:[%s8 + $0x10] sm:$0xf]
        %v1202 = vld [vmem:[%s8 + $0x14] sm:$0xf]
        %v1203 = vld [vmem:[%s8 + $0x18] sm:$0xf]
        %v1204 = vld [vmem:[%s8 + $0x1c] sm:$0xf]
        %v1205 = vld [vmem:[#allocation10] sm:$0x1]
        %v1207 = vperm.slane %v1205, 0
        %v1217 = vunpack.c.l.b16 %v1197
        %v1218 = vunpack.c.l.b16 %v1198
        %v1219 = vunpack.c.l.b16 %v1199
        %v1220 = vunpack.c.l.b16 %v1200
        %v1221 = vunpack.c.l.b16 %v1201
        %v1222 = vunpack.c.l.b16 %v1202
        %v1223 = vunpack.c.l.b16 %v1203
        %v1224 = vunpack.c.l.b16 %v1204
        %v1225 = vpack.c.b16 %v1218, %v1217
        %v1226 = vpack.c.b16 %v1220, %v1219
        %v1227 = vpack.c.b16 %v1222, %v1221
        %v1228 = vpack.c.b16 %v1224, %v1223
        %vm1233 = vcmask 523264
        %v1235 = vsel %vm1233, %v1196, 0
        %1237 = vmatpush.bf16.msra.mxu0 0
        %1238 = vmatpush.bf16.msra.mxu0 0
        %1239 = vmatpush.bf16.msra.mxu0 0
        %1240 = vmatpush.bf16.msra.mxu0 0
        %1241 = vmatpush.bf16.msra.mxu0 %v1228
        %1242 = vmatpush.bf16.msra.mxu0 %v1227
        %1243 = vmatpush.bf16.msra.mxu0 %v1226
        %1244 = vmatpush.bf16.msra.mxu0 %v1225
        %1245 = vmatmul.bf16.gmra.mxu0 %v1235
        %v1246 = vpop.f32.mrf.mxu0
        %v1247 = vadd.f32 %v1207, %v1246
        %v1248 = vpop.f32.mrf.mxu0
        %1249 = vdwg.mxu0
        %v1250 = vadd.f32 %v1157, %v1247
        %v1251 = vsel %vm636, %v1250, 0.0
        %1252 = vadd.xlane.f32.xlu0 %v1251
        %v1253 = vpop.xlane.xlu0 %1252
        %v1254 = vmul.f32 %v1253, %v1136
        %v1255 = vmul.f32 %v1250, %v1250
        %v1256 = vsel %vm636, %v1255, 0.0
        %1257 = vadd.xlane.f32.xlu0 %v1256
        %v1258 = vpop.xlane.xlu0 %1257
        %v1259 = vmul.f32 %v1258, %v1136
        %v1260 = vsub.f32 %v1250, %v1254
        %v1261 = vmul.f32 %v1254, %v1254
        %v1262 = vsub.f32 %v1259, %v1261
        %v1263 = vadd.f32 %v1262, 1e-05
        %v1264 = vrsqrt.pop %v1263
        %v1265 = vmul.f32 %v1264, %v1263
        %v1266 = vmul.f32 %v1265, %v1264
        %v1267 = vmul.f32 0.5, %v1266
        %v1268 = vsub.f32 1.5, %v1267
        %v1269 = vmul.f32 %v1264, %v1268
        %vm1270 = vweird.f32 %v1263
        %vm1271 = vweird.f32 %v1264
        %vm1272 = vmor %vm1270, %vm1271
        %v1273 = vsel %vm1272, %v1264, %v1269
        %v1274 = vmul.f32 %v1260, %v1273
        %v1275 = vpack.c.bf16 %v1274, %v1274
        %v1276 = vld [vmem:[%s10] sm:$0xf]
        %v1277 = vld [vmem:[%s10 + $0x4] sm:$0xf]
        %v1278 = vld [vmem:[%s10 + $0x8] sm:$0xf]
        %v1279 = vld [vmem:[%s10 + $0xc] sm:$0xf]
        %v1280 = vld [vmem:[%s11] sm:$0x1]
        %v1282 = vperm.slane %v1280, 0
        %v1288 = vunpack.c.l.b16 %v1276
        %v1289 = vunpack.c.l.b16 %v1277
        %v1290 = vunpack.c.l.b16 %v1278
        %v1291 = vunpack.c.l.b16 %v1279
        %v1292 = vpack.c.b16 %v1289, %v1288
        %v1293 = vpack.c.b16 %v1291, %v1290
        %v1297 = vsel %vm636, %v1275, 0
        %1299 = vmatpush.bf16.msra.mxu0 0
        %1300 = vmatpush.bf16.msra.mxu0 0
        %1301 = vmatpush.bf16.msra.mxu0 0
        %1302 = vmatpush.bf16.msra.mxu0 0
        %1303 = vmatpush.bf16.msra.mxu0 0
        %1304 = vmatpush.bf16.msra.mxu0 0
        %1305 = vmatpush.bf16.msra.mxu0 %v1293
        %1306 = vmatpush.bf16.msra.mxu0 %v1292
        %1307 = vmatmul.bf16.gmra.mxu0 %v1297
        %v1308 = vpop.f32.mrf.mxu0
        %v1309 = vadd.f32 %v1282, %v1308
        %v1310 = vpop.f32.mrf.mxu0
        %1311 = vdwg.mxu0
        %v1312 = vmax.f32 %v1309, 0.0
        %v1313 = vpack.c.bf16 %v1312, %v1312
        %v1314 = vld [vmem:[%s12] sm:$0xf]
        %v1315 = vld [vmem:[%s12 + $0x4] sm:$0xf]
        %v1316 = vld [vmem:[%s13] sm:$0x1]
        %v1318 = vperm.slane %v1316, 0
        %v1322 = vunpack.c.l.b16 %v1314
        %v1323 = vunpack.c.l.b16 %v1315
        %v1324 = vpack.c.b16 %v1323, %v1322
        %vm1326 = vcmask 130048
        %v1328 = vsel %vm1326, %v1313, 0
        %1330 = vmatpush.bf16.msra.mxu0 0
        %1331 = vmatpush.bf16.msra.mxu0 0
        %1332 = vmatpush.bf16.msra.mxu0 0
        %1333 = vmatpush.bf16.msra.mxu0 0
        %1334 = vmatpush.bf16.msra.mxu0 0
        %1335 = vmatpush.bf16.msra.mxu0 0
        %1336 = vmatpush.bf16.msra.mxu0 0
        %1337 = vmatpush.bf16.msra.mxu0 %v1324
        %1338 = vmatmul.bf16.gmra.mxu0 %v1328
        %v1339 = vpop.f32.mrf.mxu0
        %v1340 = vadd.f32 %v1318, %v1339
        %v1341 = vpop.f32.mrf.mxu0
        %1342 = vdwg.mxu0
        %v1343 = vadd.f32 %v613, %v1340
        %v1344 = vadd.f32 %v1343, %v1274
        %v1345 = vsel %vm636, %v1344, 0.0
        %1346 = vadd.xlane.f32.xlu0 %v1345
        %v1347 = vpop.xlane.xlu0 %1346
        %v1348 = vmul.f32 %v1347, %v1136
        %v1349 = vmul.f32 %v1344, %v1344
        %v1350 = vsel %vm636, %v1349, 0.0
        %1351 = vadd.xlane.f32.xlu0 %v1350
        %v1352 = vpop.xlane.xlu0 %1351
        %v1353 = vmul.f32 %v1352, %v1136
        %v1354 = vsub.f32 %v1344, %v1348
        %v1355 = vmul.f32 %v1348, %v1348
        %v1356 = vsub.f32 %v1353, %v1355
        %v1357 = vadd.f32 %v1356, 1e-05
        %v1358 = vrsqrt.pop %v1357
        %v1359 = vmul.f32 %v1358, %v1357
        %v1360 = vmul.f32 %v1359, %v1358
        %v1361 = vmul.f32 0.5, %v1360
        %v1362 = vsub.f32 1.5, %v1361
        %v1363 = vmul.f32 %v1358, %v1362
        %vm1364 = vweird.f32 %v1357
        %vm1365 = vweird.f32 %v1358
        %vm1366 = vmor %vm1364, %vm1365
        %v1367 = vsel %vm1366, %v1358, %v1363
        %v1368 = vmul.f32 %v1354, %v1367
        %v1369 = vld [vmem:[%s14] sm:$0x1]
        %v1371 = vperm.slane %v1369, 0
        %v1373 = vmul.f32 %v1368, %v1371
        %v1374 = vld [vmem:[%s15] sm:$0x1]
        %v1376 = vperm.slane %v1374, 0
        %v1378 = vadd.f32 %v1373, %v1376
        %1379 = vst.msk [vmem:[%s607] sm:$0xff] %vm636, %v1378
        %s1380 = sand.u32 %s389, 1
        %s1381 = scalar_lea.sflag [#allocation4], %s1380
        %s1382 = sand.u32 %s389, 1
        %s1383 = smul.addr %s1382, 8
        %s1384 = scalar_lea.vmem [#allocation11], %s1383
        // Predicated region
        $region105: #{tpu_custom_call.1} parent=83 // pred_check
          %p1385 = pneg %p399
        $region106: #{tpu_custom_call.1} parent=83 // pred_check_branch
          %1387 = sbr.rel (%p1385) target = $region108
        $region107: #{tpu_custom_call.1} parent=83 // pred_region
          %1389 = vsyncadd %s1381, 0
          %s1390 = smul.addr %s35, 8
          %s1391 = scalar_lea.hbm %s16, %s1390
          %s1393 = sshll.u32 %s1384, 4
          %s1394 = int_to_ptr.vmem [resolvable:$true] %s1393
          %s1395 = sshll.u32 %s1391, 4
          %s1396 = int_to_ptr.hbm [resolvable:$true] %s1395
          %1398 = dma.vmem_to_hbm [thread:$0]  %s1394, 128, %s1396, %s1381
        $region108: #{tpu_custom_call.1} parent=83 // pred_fallthru
          _
      $region84: #{tpu_custom_call.1} parent=5 // pred_fallthru
        _
      %p1399 = scmp.le.s32.totalorder 2, %s30
      // Predicated region
      $region109: #{tpu_custom_call.1} parent=5 // pred_check
        %p1400 = pneg %p1399
      $region110: #{tpu_custom_call.1} parent=5 // pred_check_branch
        %1402 = sbr.rel (%p1400) target = $region112
      $region111: #{tpu_custom_call.1} parent=5 // pred_region
        %s1403 = ssub.s32 %s30, 2
        // Predicated region
        $region113: #{tpu_custom_call.1} parent=111 // pred_check
          %p1404 = pneg %p405
        $region114: #{tpu_custom_call.1} parent=111 // pred_check_branch
          %1406 = sbr.rel (%p1404) target = $region116
        $region115: #{tpu_custom_call.1} parent=111 // pred_region
          %s1407 = sand.u32 %s390, 1
          %s1408 = scalar_lea.sflag [#allocation4], %s1407
          %s1409 = sand.u32 %s390, 1
          %s1410 = smul.addr %s1409, 8
          %s1411 = scalar_lea.vmem [#allocation11], %s1410
          %1413 = dma.done %s1408, 128
        $region116: #{tpu_custom_call.1} parent=111 // pred_fallthru
          _
      $region112: #{tpu_custom_call.1} parent=5 // pred_fallthru
        _
    $region6: #{tpu_custom_call.1} parent=1 // loop_footer
      %s34 = sadd.s32 1, %s30
    $region7: #{tpu_custom_call.1} parent=1 // loop_footer_branch
      %29 = sbr.rel target = $region3
    $region8: #{tpu_custom_call.1} parent=1 // loop_exit
      _
    %1414 = vsyncpa [#allocation3], 1
    %s1415 = scalar_lea.sflag [#allocation3], 1
    %1416 = vsyncpa %s1415, 1
    %1417 = vsyncpa [#allocation6], 1
    %1418 = vsyncpa [#allocation9], 1
    %1419 = vsyncpa [#allocation4], 1
    %s1420 = scalar_lea.sflag [#allocation4], 1
    %1421 = vsyncpa %s1420, 1

</llo_original>
